<compile_context>
chip_gen: v5e
topology: v5e:2x2
jax: 0.10.0
libtpu: 0.0.40
codegen_flags: <defaults>
</compile_context>

<pallas_src>
import numpy as np
import jax
import jax.numpy as jnp
from jax import lax
from jax.experimental import pallas as pl
from jax.experimental.pallas import tpu as pltpu


# Order of Linear layers as defined by the PyTorch module.
PARAM_ORDER = (
    "input_layer",     # (CODE_LEN, H)
    "h1",              # (H, H)
    "skipin_to_2",     # (H, H)
    "skipin_to_3",     # (H, H)
    "h2",              # (H, H)
    "skip1_to_out",    # (H, H)
    "skip2_to_out",    # (H, H)
    "h3",              # (H, H)
    "fc_mu",           # (H, CODE_LEN)
    "fc_s",            # (H, CODE_LEN)
)


# ----------------------------- Pallas kernel -----------------------------
def prior_network_kernel(x_ref, cb_ref, cb2_ref,
                         w_in_ref, w_hid_ref, w_skip_ref, w_out_ref, b_ref,
                         out_ref):
    x = x_ref[...]           # (TB, L)   query codes for this batch block
    cb = cb_ref[...]         # (N, L)    full codebook
    cb2 = cb2_ref[...]       # (1, N)    precomputed sum(cb**2, axis=1)
    TB = x.shape[0]
    N = cb.shape[0]
    H = w_in_ref.shape[1]
    L2 = w_out_ref.shape[1]  # 2 * CODE_LEN

    # ---- kneighbors(): distances to every codebook row --------------------
    # The "+ x^2" term of the squared-L2 distance is constant per row and
    # cannot change the argmin, so it is dropped.
    dists = (-2.0 * jnp.dot(x, cb.T, preferred_element_type=jnp.float32)
             + cb2)                                            # (TB, N)

    # ---- batch_pick_close_neighbor(), eval mode: nearest neighbor ---------
    # TODO(synk): training-mode picks a random one of the k=5 nearest via a
    # numpy RandomState side effect; eval mode (argmin) is implemented here.
    minval = jnp.min(dists, axis=1, keepdims=True)             # (TB, 1)
    iota = lax.broadcasted_iota(jnp.int32, (TB, N), 1)
    nn_idx = jnp.min(jnp.where(dists <= minval, iota, N), axis=1)   # (TB,)

    # Gather the selected codebook rows with a one-hot matmul (MXU-friendly).
    onehot = (iota == nn_idx[:, None]).astype(jnp.float32)     # (TB, N)
    prev = jnp.dot(onehot, cb, preferred_element_type=jnp.float32)  # (TB, L)

    # ---- encode(): 3 hidden tanh layers + skip connections ----------------
    b = b_ref[...]           # (8, 3H) bias slab (rows padded to 3H lanes)
    w_hid = w_hid_ref[...]   # (4H, H) slab: [h1; h2; skip2_to_out; h3]

    def lin(h, w, brow, width):
        return (jnp.dot(h, w, preferred_element_type=jnp.float32)
                + b[brow:brow + 1, :width])

    i_ = jnp.tanh(lin(prev, w_in_ref[...], 0, H))
    h1 = jnp.tanh(lin(i_, w_hid[0:H, :], 1, H))
    # Fused: skipin_to_2 | skipin_to_3 | skip1_to_out applied to h1 at once.
    skip = jnp.tanh(lin(h1, w_skip_ref[...], 2, 3 * H))         # (TB, 3H)
    s2 = skip[:, 0:H]
    s3 = skip[:, H:2 * H]
    o1 = skip[:, 2 * H:3 * H]
    h2 = jnp.tanh(lin(h1 + s2, w_hid[H:2 * H, :], 3, H))
    o2 = jnp.tanh(lin(h2, w_hid[2 * H:3 * H, :], 4, H))
    o3 = jnp.tanh(lin(h2 + s3, w_hid[3 * H:4 * H, :], 5, H))
    out = o1 + o2 + o3
    # Fused fc_mu | fc_s -> single (TB, 2L) write; split in the wrapper.
    out_ref[...] = lin(out, w_out_ref[...], 6, L2)


# ------------------------- host-side param packing -------------------------
def pack_params(params, codebook):
    """Concatenate the 20 weight/bias arrays into a few VMEM-friendly slabs."""
    w_in, b_in = params["input_layer"]
    w_h1, b_h1 = params["h1"]
    w_s2, b_s2 = params["skipin_to_2"]
    w_s3, b_s3 = params["skipin_to_3"]
    w_h2, b_h2 = params["h2"]
    w_o1, b_o1 = params["skip1_to_out"]
    w_o2, b_o2 = params["skip2_to_out"]
    w_h3, b_h3 = params["h3"]
    w_mu, b_mu = params["fc_mu"]
    w_ls, b_ls = params["fc_s"]

    H = w_in.shape[1]
    width = 3 * H   # widest bias row (fused skip bias)

    # Weights that all consume h1 -> one (H, 3H) matmul.
    w_skip = jnp.concatenate([w_s2, w_s3, w_o1], axis=1)        # (H, 3H)
    b_skip = jnp.concatenate([b_s2, b_s3, b_o1], axis=1)        # (1, 3H)
    # Output heads fused -> one (H, 2L) matmul.
    w_out = jnp.concatenate([w_mu, w_ls], axis=1)               # (H, 2L)
    b_out = jnp.concatenate([b_mu, b_ls], axis=1)               # (1, 2L)
    # Remaining HxH weights stacked along sublanes -> one (4H, H) slab.
    w_hid = jnp.concatenate([w_h1, w_h2, w_o2, w_h3], axis=0)   # (4H, H)

    def padrow(bvec):
        return jnp.pad(bvec, ((0, 0), (0, width - bvec.shape[1])))

    bias = jnp.concatenate(
        [padrow(b_in), padrow(b_h1), padrow(b_skip), padrow(b_h2),
         padrow(b_o2), padrow(b_h3), padrow(b_out),
         jnp.zeros((1, width), jnp.float32)], axis=0)           # (8, 3H)

    # Cached codebook squared norms (PyTorch's self.codes2).
    cb2 = jnp.sum(codebook * codebook, axis=1, keepdims=True).T  # (1, N)

    return dict(codebook=codebook, cb2=cb2, w_in=w_in, w_hid=w_hid,
                w_skip=w_skip, w_out=w_out, bias=bias)


# --------------------------------- wrapper ---------------------------------
def prior_network_forward(x, packed, *, block_b=128):
    """x: (B, CODE_LEN) query codes. Returns (mu, logstd), each (B, CODE_LEN)."""
    B, L = x.shape
    cb = packed["codebook"]
    N = cb.shape[0]
    H = packed["w_in"].shape[1]

    # Batch block: at most block_b rows, rounded up to a sublane multiple.
    TB = min(block_b, pl.cdiv(B, 8) * 8)
    Bp = pl.cdiv(B, TB) * TB
    if Bp != B:
        x = jnp.pad(x, ((0, Bp - B), (0, 0)))
    nb = Bp // TB

    def full_spec(shape):
        return pl.BlockSpec(shape, lambda i: (0,) * len(shape))

    in_specs = [
        pl.BlockSpec((TB, L), lambda i: (i, 0)),      # x, blocked over batch
        full_spec((N, L)),                            # codebook (whole array)
        full_spec((1, N)),                            # cb2
        full_spec((L, H)),                            # w_in
        full_spec((4 * H, H)),                        # w_hid slab
        full_spec((H, 3 * H)),                        # w_skip fused
        full_spec((H, 2 * L)),                        # w_out fused (mu||logstd)
        full_spec((8, 3 * H)),                        # bias slab
    ]
    out_specs = pl.BlockSpec((TB, 2 * L), lambda i: (i, 0))

    # TODO(synk): for production-size codebooks (N_TRAIN >> 10^4) tile the
    # distance computation over N (reduction axis) instead of keeping the
    # whole codebook resident in VMEM.
    out = pl.pallas_call(
        prior_network_kernel,
        out_shape=jax.ShapeDtypeStruct((Bp, 2 * L), jnp.float32),
        grid=(nb,),
        in_specs=in_specs,
        out_specs=out_specs,
        compiler_params=pltpu.CompilerParams(
            dimension_semantics=("parallel",)),
    )(x, cb, packed["cb2"], packed["w_in"], packed["w_hid"],
      packed["w_skip"], packed["w_out"], packed["bias"])

    mu = out[:B, :L]
    logstd = out[:B, L:]
    return mu, logstd


# ---------------- parameter init (deterministic, PyTorch-Linear-style) -----
def init_linear(key, fan_in, fan_out):
    kw, kb = jax.random.split(key)
    bound = 1.0 / np.sqrt(fan_in)
    w = jax.random.uniform(kw, (fan_in, fan_out), jnp.float32, -bound, bound)
    b = jax.random.uniform(kb, (1, fan_out), jnp.float32, -bound, bound)
    return w, b


# ---------------- pure-JAX reference for correctness checking --------------
def reference_forward(x, codebook, params):
    x2 = jnp.sum(x * x, axis=1, keepdims=True)
    cb2 = jnp.sum(codebook * codebook, axis=1)
    dists = -2.0 * x @ codebook.T + x2 + cb2[None, :]
    nn_idx = jnp.argmin(dists, axis=1)
    prev = jnp.take(codebook, nn_idx, axis=0)

    def lin(name, h):
        w, b = params[name]
        return h @ w + b

    i = jnp.tanh(lin("input_layer", prev))
    h1 = jnp.tanh(lin("h1", i))
    s2 = jnp.tanh(lin("skipin_to_2", h1))
    s3 = jnp.tanh(lin("skipin_to_3", h1))
    h2 = jnp.tanh(lin("h2", h1 + s2))
    o1 = jnp.tanh(lin("skip1_to_out", h1))
    o2 = jnp.tanh(lin("skip2_to_out", h2))
    o3 = jnp.tanh(lin("h3", h2 + s3))
    out = o1 + o2 + o3
    return lin("fc_mu", out), lin("fc_s", out)


if __name__ == "__main__":
    B = 256          # batch of query codes (amortizes fixed per-call cost)
    CODE_LEN = 16    # code_length
    N_HIDDEN = 32    # n_hidden
    N_TRAIN = 128    # size_training_set

    # Codebook exactly like the PyTorch __init__: np.random.RandomState(4543)
    rdn = np.random.RandomState(4543)
    codebook = jnp.asarray(
        rdn.standard_normal((N_TRAIN, CODE_LEN)), dtype=jnp.float32)

    dims = {
        "input_layer": (CODE_LEN, N_HIDDEN),
        "h1": (N_HIDDEN, N_HIDDEN),
        "skipin_to_2": (N_HIDDEN, N_HIDDEN),
        "skipin_to_3": (N_HIDDEN, N_HIDDEN),
        "h2": (N_HIDDEN, N_HIDDEN),
        "skip1_to_out": (N_HIDDEN, N_HIDDEN),
        "skip2_to_out": (N_HIDDEN, N_HIDDEN),
        "h3": (N_HIDDEN, N_HIDDEN),
        "fc_mu": (N_HIDDEN, CODE_LEN),
        "fc_s": (N_HIDDEN, CODE_LEN),
    }

    key = jax.random.PRNGKey(0)
    params = {}
    for name in PARAM_ORDER:
        key, sub = jax.random.split(key)
        fi, fo = dims[name]
        params[name] = init_linear(sub, fi, fo)

    key, xk = jax.random.split(key)
    x = jax.random.normal(xk, (B, CODE_LEN), dtype=jnp.float32)

    packed = pack_params(params, codebook)   # one-time host-side packing
    mu, logstd = prior_network_forward(x, packed, block_b=128)
    jax.block_until_ready((mu, logstd))

    mu_ref, logstd_ref = reference_forward(x, codebook, params)
    np.testing.assert_allclose(np.asarray(mu), np.asarray(mu_ref),
                               rtol=1e-4, atol=1e-4)
    np.testing.assert_allclose(np.asarray(logstd), np.asarray(logstd_ref),
                               rtol=1e-4, atol=1e-4)
    print("KERNEL_OK")
</pallas_src>

<mosaic_0001>
module attributes {stable_mosaic.version = 11 : i64} {
  func.func @prior_network_kernel(%arg0: i32, %arg1: memref<128x16xf32, #tpu.memory_space<vmem>>, %arg2: memref<128x16xf32, #tpu.memory_space<vmem>>, %arg3: memref<1x128xf32, #tpu.memory_space<vmem>>, %arg4: memref<16x32xf32, #tpu.memory_space<vmem>>, %arg5: memref<128x32xf32, #tpu.memory_space<vmem>>, %arg6: memref<32x96xf32, #tpu.memory_space<vmem>>, %arg7: memref<32x32xf32, #tpu.memory_space<vmem>>, %arg8: memref<8x96xf32, #tpu.memory_space<vmem>>, %arg9: memref<128x32xf32, #tpu.memory_space<vmem>>) attributes {dimension_semantics = [#tpu.dimension_semantics<parallel>], iteration_bounds = array<i64: 2>, scalar_prefetch = 0 : i64, scratch_operands = 0 : i64, tpu.core_type = #tpu.core_type<tc>, window_params = [{transform_indices = @transform_0, window_bounds = array<i64: 128, 16>}, {pipeline_mode = #tpu.pipeline_mode<synchronous>, transform_indices = @transform_1, window_bounds = array<i64: 128, 16>}, {pipeline_mode = #tpu.pipeline_mode<synchronous>, transform_indices = @transform_2, window_bounds = array<i64: 1, 128>}, {pipeline_mode = #tpu.pipeline_mode<synchronous>, transform_indices = @transform_3, window_bounds = array<i64: 16, 32>}, {pipeline_mode = #tpu.pipeline_mode<synchronous>, transform_indices = @transform_4, window_bounds = array<i64: 128, 32>}, {pipeline_mode = #tpu.pipeline_mode<synchronous>, transform_indices = @transform_5, window_bounds = array<i64: 32, 96>}, {pipeline_mode = #tpu.pipeline_mode<synchronous>, transform_indices = @transform_6, window_bounds = array<i64: 32, 32>}, {pipeline_mode = #tpu.pipeline_mode<synchronous>, transform_indices = @transform_7, window_bounds = array<i64: 8, 96>}, {transform_indices = @transform_8, window_bounds = array<i64: 128, 32>}]} {
    %c0 = arith.constant 0 : index
    %c0_0 = arith.constant 0 : index
    %0 = vector.load %arg1[%c0, %c0_0] : memref<128x16xf32, #tpu.memory_space<vmem>>, vector<128x16xf32>
    %c0_1 = arith.constant 0 : index
    %c0_2 = arith.constant 0 : index
    %1 = vector.load %arg2[%c0_1, %c0_2] : memref<128x16xf32, #tpu.memory_space<vmem>>, vector<128x16xf32>
    %c0_3 = arith.constant 0 : index
    %c0_4 = arith.constant 0 : index
    %2 = vector.load %arg3[%c0_3, %c0_4] : memref<1x128xf32, #tpu.memory_space<vmem>>, vector<1x128xf32>
    %3 = tpu.transpose %1, [1, 0] : vector<128x16xf32> -> vector<16x128xf32>
    %cst = arith.constant dense<0.000000e+00> : vector<128x128xf32>
    %4 = tpu.matmul %0, %3, %cst {dimension_numbers = #tpu.dot_dimension_numbers<[1], [0], [0], [1], [0, 0, 1, 1], [], []>} : vector<128x16xf32>, vector<16x128xf32>, vector<128x128xf32> -> vector<128x128xf32>
    %cst_5 = arith.constant -2.000000e+00 : f32
    %5 = vector.broadcast %cst_5 : f32 to vector<128x128xf32>
    %6 = arith.mulf %5, %4 : vector<128x128xf32>
    %7 = vector.broadcast %2 : vector<1x128xf32> to vector<128x128xf32>
    %8 = arith.addf %6, %7 : vector<128x128xf32>
    %cst_6 = arith.constant dense<0x7F800000> : vector<128xf32>
    %9 = vector.multi_reduction <minimumf>, %8, %cst_6 [1] : vector<128x128xf32> to vector<128xf32>
    %10 = vector.shape_cast %9 : vector<128xf32> to vector<128x1xf32>
    %11 = tpu.iota {dimensions = array<i32: 1>} : vector<128x128xi32>
    %12 = vector.broadcast %10 : vector<128x1xf32> to vector<128x128xf32>
    %13 = arith.cmpf ole, %8, %12 : vector<128x128xf32>
    %c128_i32 = arith.constant 128 : i32
    %14 = vector.broadcast %c128_i32 : i32 to vector<128x128xi32>
    %15 = arith.select %13, %11, %14 : vector<128x128xi1>, vector<128x128xi32>
    %cst_7 = arith.constant dense<2147483647> : vector<128xi32>
    %16 = vector.multi_reduction <minsi>, %15, %cst_7 [1] : vector<128x128xi32> to vector<128xi32>
    %17 = vector.shape_cast %16 : vector<128xi32> to vector<128x1xi32>
    %18 = vector.broadcast %17 : vector<128x1xi32> to vector<128x128xi32>
    %19 = arith.cmpi eq, %11, %18 : vector<128x128xi32>
    %20 = arith.extui %19 : vector<128x128xi1> to vector<128x128xi32>
    %21 = arith.sitofp %20 : vector<128x128xi32> to vector<128x128xf32>
    %cst_8 = arith.constant dense<0.000000e+00> : vector<128x16xf32>
    %22 = tpu.matmul %21, %1, %cst_8 {dimension_numbers = #tpu.dot_dimension_numbers<[1], [0], [0], [1], [0, 0, 1, 1], [], []>} : vector<128x128xf32>, vector<128x16xf32>, vector<128x16xf32> -> vector<128x16xf32>
    %c0_9 = arith.constant 0 : index
    %c0_10 = arith.constant 0 : index
    %23 = vector.load %arg8[%c0_9, %c0_10] : memref<8x96xf32, #tpu.memory_space<vmem>>, vector<8x96xf32>
    %c0_11 = arith.constant 0 : index
    %c0_12 = arith.constant 0 : index
    %24 = vector.load %arg5[%c0_11, %c0_12] : memref<128x32xf32, #tpu.memory_space<vmem>>, vector<128x32xf32>
    %c0_13 = arith.constant 0 : index
    %c0_14 = arith.constant 0 : index
    %25 = vector.load %arg4[%c0_13, %c0_14] : memref<16x32xf32, #tpu.memory_space<vmem>>, vector<16x32xf32>
    %cst_15 = arith.constant dense<0.000000e+00> : vector<128x32xf32>
    %26 = tpu.matmul %22, %25, %cst_15 {dimension_numbers = #tpu.dot_dimension_numbers<[1], [0], [0], [1], [0, 0, 1, 1], [], []>} : vector<128x16xf32>, vector<16x32xf32>, vector<128x32xf32> -> vector<128x32xf32>
    %27 = vector.extract_strided_slice %23 {offsets = [0, 0], sizes = [1, 32], strides = [1, 1]} : vector<8x96xf32> to vector<1x32xf32>
    %28 = vector.broadcast %27 : vector<1x32xf32> to vector<128x32xf32>
    %29 = arith.addf %26, %28 : vector<128x32xf32>
    %30 = math.tanh %29 : vector<128x32xf32>
    %31 = vector.extract_strided_slice %24 {offsets = [0, 0], sizes = [32, 32], strides = [1, 1]} : vector<128x32xf32> to vector<32x32xf32>
    %cst_16 = arith.constant dense<0.000000e+00> : vector<128x32xf32>
    %32 = tpu.matmul %30, %31, %cst_16 {dimension_numbers = #tpu.dot_dimension_numbers<[1], [0], [0], [1], [0, 0, 1, 1], [], []>} : vector<128x32xf32>, vector<32x32xf32>, vector<128x32xf32> -> vector<128x32xf32>
    %33 = vector.extract_strided_slice %23 {offsets = [1, 0], sizes = [1, 32], strides = [1, 1]} : vector<8x96xf32> to vector<1x32xf32>
    %34 = vector.broadcast %33 : vector<1x32xf32> to vector<128x32xf32>
    %35 = arith.addf %32, %34 : vector<128x32xf32>
    %36 = math.tanh %35 : vector<128x32xf32>
    %c0_17 = arith.constant 0 : index
    %c0_18 = arith.constant 0 : index
    %37 = vector.load %arg6[%c0_17, %c0_18] : memref<32x96xf32, #tpu.memory_space<vmem>>, vector<32x96xf32>
    %cst_19 = arith.constant dense<0.000000e+00> : vector<128x96xf32>
    %38 = tpu.matmul %36, %37, %cst_19 {dimension_numbers = #tpu.dot_dimension_numbers<[1], [0], [0], [1], [0, 0, 1, 1], [], []>} : vector<128x32xf32>, vector<32x96xf32>, vector<128x96xf32> -> vector<128x96xf32>
    %39 = vector.extract_strided_slice %23 {offsets = [2, 0], sizes = [1, 96], strides = [1, 1]} : vector<8x96xf32> to vector<1x96xf32>
    %40 = vector.broadcast %39 : vector<1x96xf32> to vector<128x96xf32>
    %41 = arith.addf %38, %40 : vector<128x96xf32>
    %42 = math.tanh %41 : vector<128x96xf32>
    %43 = vector.extract_strided_slice %42 {offsets = [0, 0], sizes = [128, 32], strides = [1, 1]} : vector<128x96xf32> to vector<128x32xf32>
    %44 = vector.extract_strided_slice %42 {offsets = [0, 32], sizes = [128, 32], strides = [1, 1]} : vector<128x96xf32> to vector<128x32xf32>
    %45 = vector.extract_strided_slice %42 {offsets = [0, 64], sizes = [128, 32], strides = [1, 1]} : vector<128x96xf32> to vector<128x32xf32>
    %46 = arith.addf %36, %43 : vector<128x32xf32>
    %47 = vector.extract_strided_slice %24 {offsets = [32, 0], sizes = [32, 32], strides = [1, 1]} : vector<128x32xf32> to vector<32x32xf32>
    %cst_20 = arith.constant dense<0.000000e+00> : vector<128x32xf32>
    %48 = tpu.matmul %46, %47, %cst_20 {dimension_numbers = #tpu.dot_dimension_numbers<[1], [0], [0], [1], [0, 0, 1, 1], [], []>} : vector<128x32xf32>, vector<32x32xf32>, vector<128x32xf32> -> vector<128x32xf32>
    %49 = vector.extract_strided_slice %23 {offsets = [3, 0], sizes = [1, 32], strides = [1, 1]} : vector<8x96xf32> to vector<1x32xf32>
    %50 = vector.broadcast %49 : vector<1x32xf32> to vector<128x32xf32>
    %51 = arith.addf %48, %50 : vector<128x32xf32>
    %52 = math.tanh %51 : vector<128x32xf32>
    %53 = vector.extract_strided_slice %24 {offsets = [64, 0], sizes = [32, 32], strides = [1, 1]} : vector<128x32xf32> to vector<32x32xf32>
    %cst_21 = arith.constant dense<0.000000e+00> : vector<128x32xf32>
    %54 = tpu.matmul %52, %53, %cst_21 {dimension_numbers = #tpu.dot_dimension_numbers<[1], [0], [0], [1], [0, 0, 1, 1], [], []>} : vector<128x32xf32>, vector<32x32xf32>, vector<128x32xf32> -> vector<128x32xf32>
    %55 = vector.extract_strided_slice %23 {offsets = [4, 0], sizes = [1, 32], strides = [1, 1]} : vector<8x96xf32> to vector<1x32xf32>
    %56 = vector.broadcast %55 : vector<1x32xf32> to vector<128x32xf32>
    %57 = arith.addf %54, %56 : vector<128x32xf32>
    %58 = math.tanh %57 : vector<128x32xf32>
    %59 = arith.addf %52, %44 : vector<128x32xf32>
    %60 = vector.extract_strided_slice %24 {offsets = [96, 0], sizes = [32, 32], strides = [1, 1]} : vector<128x32xf32> to vector<32x32xf32>
    %cst_22 = arith.constant dense<0.000000e+00> : vector<128x32xf32>
    %61 = tpu.matmul %59, %60, %cst_22 {dimension_numbers = #tpu.dot_dimension_numbers<[1], [0], [0], [1], [0, 0, 1, 1], [], []>} : vector<128x32xf32>, vector<32x32xf32>, vector<128x32xf32> -> vector<128x32xf32>
    %62 = vector.extract_strided_slice %23 {offsets = [5, 0], sizes = [1, 32], strides = [1, 1]} : vector<8x96xf32> to vector<1x32xf32>
    %63 = vector.broadcast %62 : vector<1x32xf32> to vector<128x32xf32>
    %64 = arith.addf %61, %63 : vector<128x32xf32>
    %65 = math.tanh %64 : vector<128x32xf32>
    %66 = arith.addf %45, %58 : vector<128x32xf32>
    %67 = arith.addf %66, %65 : vector<128x32xf32>
    %c0_23 = arith.constant 0 : index
    %c0_24 = arith.constant 0 : index
    %68 = vector.load %arg7[%c0_23, %c0_24] : memref<32x32xf32, #tpu.memory_space<vmem>>, vector<32x32xf32>
    %cst_25 = arith.constant dense<0.000000e+00> : vector<128x32xf32>
    %69 = tpu.matmul %67, %68, %cst_25 {dimension_numbers = #tpu.dot_dimension_numbers<[1], [0], [0], [1], [0, 0, 1, 1], [], []>} : vector<128x32xf32>, vector<32x32xf32>, vector<128x32xf32> -> vector<128x32xf32>
    %70 = vector.extract_strided_slice %23 {offsets = [6, 0], sizes = [1, 32], strides = [1, 1]} : vector<8x96xf32> to vector<1x32xf32>
    %71 = vector.broadcast %70 : vector<1x32xf32> to vector<128x32xf32>
    %72 = arith.addf %69, %71 : vector<128x32xf32>
    %c0_26 = arith.constant 0 : index
    %c0_27 = arith.constant 0 : index
    %73 = vector.load %arg9[%c0_26, %c0_27] : memref<128x32xf32, #tpu.memory_space<vmem>>, vector<128x32xf32>
    tpu.vector_store %arg9[%c0_26, %c0_27], %72 {strides = array<i32>} : memref<128x32xf32, #tpu.memory_space<vmem>>, vector<128x32xf32>,
    return
  }
  func.func @transform_0(%arg0: i32) -> (i32, i32) {
    %c0_i32 = arith.constant 0 : i32
    %c0_i32_0 = arith.constant 0 : i32
    return %arg0, %c0_i32 : i32, i32
  }
  func.func @transform_1(%arg0: i32) -> (i32, i32) {
    %c0_i32 = arith.constant 0 : i32
    %c0_i32_0 = arith.constant 0 : i32
    %c0_i32_1 = arith.constant 0 : i32
    return %c0_i32, %c0_i32_0 : i32, i32
  }
  func.func @transform_2(%arg0: i32) -> (i32, i32) {
    %c0_i32 = arith.constant 0 : i32
    %c0_i32_0 = arith.constant 0 : i32
    %c0_i32_1 = arith.constant 0 : i32
    return %c0_i32, %c0_i32_0 : i32, i32
  }
  func.func @transform_3(%arg0: i32) -> (i32, i32) {
    %c0_i32 = arith.constant 0 : i32
    %c0_i32_0 = arith.constant 0 : i32
    %c0_i32_1 = arith.constant 0 : i32
    return %c0_i32, %c0_i32_0 : i32, i32
  }
  func.func @transform_4(%arg0: i32) -> (i32, i32) {
    %c0_i32 = arith.constant 0 : i32
    %c0_i32_0 = arith.constant 0 : i32
    %c0_i32_1 = arith.constant 0 : i32
    return %c0_i32, %c0_i32_0 : i32, i32
  }
  func.func @transform_5(%arg0: i32) -> (i32, i32) {
    %c0_i32 = arith.constant 0 : i32
    %c0_i32_0 = arith.constant 0 : i32
    %c0_i32_1 = arith.constant 0 : i32
    return %c0_i32, %c0_i32_0 : i32, i32
  }
  func.func @transform_6(%arg0: i32) -> (i32, i32) {
    %c0_i32 = arith.constant 0 : i32
    %c0_i32_0 = arith.constant 0 : i32
    %c0_i32_1 = arith.constant 0 : i32
    return %c0_i32, %c0_i32_0 : i32, i32
  }
  func.func @transform_7(%arg0: i32) -> (i32, i32) {
    %c0_i32 = arith.constant 0 : i32
    %c0_i32_0 = arith.constant 0 : i32
    %c0_i32_1 = arith.constant 0 : i32
    return %c0_i32, %c0_i32_0 : i32, i32
  }
  func.func @transform_8(%arg0: i32) -> (i32, i32) {
    %c0_i32 = arith.constant 0 : i32
    %c0_i32_0 = arith.constant 0 : i32
    return %arg0, %c0_i32 : i32, i32
  }
}

</mosaic_0001>

<llo_original>
// kernel: tpu_custom_call.1
$region0: #{tpu_custom_call.1}
  #allocation0 [shape = 'u32[]', space=smem, size = 0x4, offset = 0x4, fixed_abs, tag = 'smem constant byte address 0x4 - core index']
  #allocation1 [shape = 'u32[72,128]{1,0:T(1,128)}', space=vmem, size = 0x9000, scoped, tag = 'internal scratch']
  %s0 = inlined_call_operand.vmem [shape: f32[256,16], index: 0, kind: input, shape index: {}]
  %s1 = inlined_call_operand.vmem [shape: f32[128,16], index: 1, kind: input, shape index: {}]
  %s2 = inlined_call_operand.vmem [shape: f32[1,128], index: 2, kind: input, shape index: {}]
  %s3 = inlined_call_operand.vmem [shape: f32[16,32], index: 3, kind: input, shape index: {}]
  %s4 = inlined_call_operand.vmem [shape: f32[128,32], index: 4, kind: input, shape index: {}]
  %s5 = inlined_call_operand.vmem [shape: f32[32,96], index: 5, kind: input, shape index: {}]
  %s6 = inlined_call_operand.vmem [shape: f32[32,32], index: 6, kind: input, shape index: {}]
  %s7 = inlined_call_operand.vmem [shape: f32[8,96], index: 7, kind: input, shape index: {}]
  %s8 = inlined_call_operand.vmem [shape: f32[256,32], index: 8, kind: output, shape index: {}]
  %s9 = sld [smem:[#allocation0]]
  $region65: #{tpu_custom_call.1} parent=0
    _
  %s11 = ssub.s32 1, %s9
  %s12 = scalar_select 0, %s11, %s9
  loop: start=0, step=1, limit=4
  $region2: #{tpu_custom_call.1} parent=0 // loop_pre_header
    _
  $region3: #{tpu_custom_call.1} parent=0 // loop_header
    %s14 = sphi 0, %s18
    %p15 = scmp.ge.s32.totalorder %s14, 4
    %s24 = sphi 0, %s26
    %s27 = sphi 0, %s24
    %s28 = sphi 0, %s27
    %s44 = sphi 0, %s28
    %s48 = sphi 0, %s48
    %s50 = sphi 0, %s48
    %s51 = sphi 0, %s50
    %s65 = sphi 0, %s51
    %s69 = sphi 0, %s69
    %s71 = sphi 0, %s69
    %s72 = sphi 0, %s71
    %s86 = sphi 0, %s72
    %s90 = sphi 0, %s90
    %s92 = sphi 0, %s90
    %s93 = sphi 0, %s92
    %s107 = sphi 0, %s93
    %s111 = sphi 0, %s111
    %s113 = sphi 0, %s111
    %s114 = sphi 0, %s113
    %s128 = sphi 0, %s114
    %s132 = sphi 0, %s132
    %s134 = sphi 0, %s132
    %s135 = sphi 0, %s134
    %s149 = sphi 0, %s135
    %s153 = sphi 0, %s153
    %s155 = sphi 0, %s153
    %s156 = sphi 0, %s155
    %s170 = sphi 0, %s156
    %s174 = sphi 0, %s174
    %s176 = sphi 0, %s174
    %s177 = sphi 0, %s176
    %s191 = sphi 0, %s177
    %s197 = sphi 0, %s199
    %s200 = sphi 0, %s197
    %s201 = sphi 0, %s200
    %s217 = sphi 0, %s201
  $region4: #{tpu_custom_call.1} parent=0 // loop_header_branch
    %17 = sbr.rel (%p15) target = $region8
  $region5: #{tpu_custom_call.1} parent=0 // loop_body
    %s19 = ssub.s32 %s14, 1
    %s20 = ssub.s32 %s14, 2
    %s21 = sadd.s32 %s14, 1
    %s22 = ssub.s32 %s14, %s21
    %p23 = scmp.eq.s32.totalorder %s22, 0
    %s25 = sadd.s32 %s24, 1
    %s26 = scalar_select %p23, %s24, %s25
    %p29 = pneg %p23
    %p30 = scmp.eq.s32.totalorder %s14, 1
    %p31 = por %p29, %p30
    %p32 = scmp.ne.s32.totalorder %s24, %s27
    %p33 = scmp.eq.s32.totalorder %s14, 0
    %p34 = por %p32, %p33
    %p35 = scmp.ne.s32.totalorder %s24, %s27
    %p36 = scmp.eq.s32.totalorder %s19, 1
    %p37 = por %p35, %p36
    %p38 = scmp.ne.s32.totalorder %s27, %s28
    %p39 = scmp.eq.s32.totalorder %s19, 0
    %p40 = por %p38, %p39
    %p41 = scmp.ne.s32.totalorder %s27, %s28
    %p42 = scmp.eq.s32.totalorder %s20, 1
    %p43 = por %p41, %p42
    %p45 = scmp.ne.s32.totalorder %s28, %s44
    %p46 = scmp.eq.s32.totalorder %s20, 0
    %p47 = por %p45, %p46
    %s49 = sadd.s32 %s48, 1
    %p52 = scmp.eq.s32.totalorder %s14, 1
    %p53 = scmp.ne.s32.totalorder %s48, %s50
    %p54 = scmp.eq.s32.totalorder %s14, 0
    %p55 = por %p53, %p54
    %p56 = scmp.ne.s32.totalorder %s48, %s50
    %p57 = scmp.eq.s32.totalorder %s19, 1
    %p58 = por %p56, %p57
    %p59 = scmp.ne.s32.totalorder %s50, %s51
    %p60 = scmp.eq.s32.totalorder %s19, 0
    %p61 = por %p59, %p60
    %p62 = scmp.ne.s32.totalorder %s50, %s51
    %p63 = scmp.eq.s32.totalorder %s20, 1
    %p64 = por %p62, %p63
    %p66 = scmp.ne.s32.totalorder %s51, %s65
    %p67 = scmp.eq.s32.totalorder %s20, 0
    %p68 = por %p66, %p67
    %s70 = sadd.s32 %s69, 1
    %p73 = scmp.eq.s32.totalorder %s14, 1
    %p74 = scmp.ne.s32.totalorder %s69, %s71
    %p75 = scmp.eq.s32.totalorder %s14, 0
    %p76 = por %p74, %p75
    %p77 = scmp.ne.s32.totalorder %s69, %s71
    %p78 = scmp.eq.s32.totalorder %s19, 1
    %p79 = por %p77, %p78
    %p80 = scmp.ne.s32.totalorder %s71, %s72
    %p81 = scmp.eq.s32.totalorder %s19, 0
    %p82 = por %p80, %p81
    %p83 = scmp.ne.s32.totalorder %s71, %s72
    %p84 = scmp.eq.s32.totalorder %s20, 1
    %p85 = por %p83, %p84
    %p87 = scmp.ne.s32.totalorder %s72, %s86
    %p88 = scmp.eq.s32.totalorder %s20, 0
    %p89 = por %p87, %p88
    %s91 = sadd.s32 %s90, 1
    %p94 = scmp.eq.s32.totalorder %s14, 1
    %p95 = scmp.ne.s32.totalorder %s90, %s92
    %p96 = scmp.eq.s32.totalorder %s14, 0
    %p97 = por %p95, %p96
    %p98 = scmp.ne.s32.totalorder %s90, %s92
    %p99 = scmp.eq.s32.totalorder %s19, 1
    %p100 = por %p98, %p99
    %p101 = scmp.ne.s32.totalorder %s92, %s93
    %p102 = scmp.eq.s32.totalorder %s19, 0
    %p103 = por %p101, %p102
    %p104 = scmp.ne.s32.totalorder %s92, %s93
    %p105 = scmp.eq.s32.totalorder %s20, 1
    %p106 = por %p104, %p105
    %p108 = scmp.ne.s32.totalorder %s93, %s107
    %p109 = scmp.eq.s32.totalorder %s20, 0
    %p110 = por %p108, %p109
    %s112 = sadd.s32 %s111, 1
    %p115 = scmp.eq.s32.totalorder %s14, 1
    %p116 = scmp.ne.s32.totalorder %s111, %s113
    %p117 = scmp.eq.s32.totalorder %s14, 0
    %p118 = por %p116, %p117
    %p119 = scmp.ne.s32.totalorder %s111, %s113
    %p120 = scmp.eq.s32.totalorder %s19, 1
    %p121 = por %p119, %p120
    %p122 = scmp.ne.s32.totalorder %s113, %s114
    %p123 = scmp.eq.s32.totalorder %s19, 0
    %p124 = por %p122, %p123
    %p125 = scmp.ne.s32.totalorder %s113, %s114
    %p126 = scmp.eq.s32.totalorder %s20, 1
    %p127 = por %p125, %p126
    %p129 = scmp.ne.s32.totalorder %s114, %s128
    %p130 = scmp.eq.s32.totalorder %s20, 0
    %p131 = por %p129, %p130
    %s133 = sadd.s32 %s132, 1
    %p136 = scmp.eq.s32.totalorder %s14, 1
    %p137 = scmp.ne.s32.totalorder %s132, %s134
    %p138 = scmp.eq.s32.totalorder %s14, 0
    %p139 = por %p137, %p138
    %p140 = scmp.ne.s32.totalorder %s132, %s134
    %p141 = scmp.eq.s32.totalorder %s19, 1
    %p142 = por %p140, %p141
    %p143 = scmp.ne.s32.totalorder %s134, %s135
    %p144 = scmp.eq.s32.totalorder %s19, 0
    %p145 = por %p143, %p144
    %p146 = scmp.ne.s32.totalorder %s134, %s135
    %p147 = scmp.eq.s32.totalorder %s20, 1
    %p148 = por %p146, %p147
    %p150 = scmp.ne.s32.totalorder %s135, %s149
    %p151 = scmp.eq.s32.totalorder %s20, 0
    %p152 = por %p150, %p151
    %s154 = sadd.s32 %s153, 1
    %p157 = scmp.eq.s32.totalorder %s14, 1
    %p158 = scmp.ne.s32.totalorder %s153, %s155
    %p159 = scmp.eq.s32.totalorder %s14, 0
    %p160 = por %p158, %p159
    %p161 = scmp.ne.s32.totalorder %s153, %s155
    %p162 = scmp.eq.s32.totalorder %s19, 1
    %p163 = por %p161, %p162
    %p164 = scmp.ne.s32.totalorder %s155, %s156
    %p165 = scmp.eq.s32.totalorder %s19, 0
    %p166 = por %p164, %p165
    %p167 = scmp.ne.s32.totalorder %s155, %s156
    %p168 = scmp.eq.s32.totalorder %s20, 1
    %p169 = por %p167, %p168
    %p171 = scmp.ne.s32.totalorder %s156, %s170
    %p172 = scmp.eq.s32.totalorder %s20, 0
    %p173 = por %p171, %p172
    %s175 = sadd.s32 %s174, 1
    %p178 = scmp.eq.s32.totalorder %s14, 1
    %p179 = scmp.ne.s32.totalorder %s174, %s176
    %p180 = scmp.eq.s32.totalorder %s14, 0
    %p181 = por %p179, %p180
    %p182 = scmp.ne.s32.totalorder %s174, %s176
    %p183 = scmp.eq.s32.totalorder %s19, 1
    %p184 = por %p182, %p183
    %p185 = scmp.ne.s32.totalorder %s176, %s177
    %p186 = scmp.eq.s32.totalorder %s19, 0
    %p187 = por %p185, %p186
    %p188 = scmp.ne.s32.totalorder %s176, %s177
    %p189 = scmp.eq.s32.totalorder %s20, 1
    %p190 = por %p188, %p189
    %p192 = scmp.ne.s32.totalorder %s177, %s191
    %p193 = scmp.eq.s32.totalorder %s20, 0
    %p194 = por %p192, %p193
    %s195 = ssub.s32 %s14, %s21
    %p196 = scmp.eq.s32.totalorder %s195, 0
    %s198 = sadd.s32 %s197, 1
    %s199 = scalar_select %p196, %s197, %s198
    %p202 = pneg %p196
    %p203 = scmp.eq.s32.totalorder %s14, 1
    %p204 = por %p202, %p203
    %p205 = scmp.ne.s32.totalorder %s197, %s200
    %p206 = scmp.eq.s32.totalorder %s14, 0
    %p207 = por %p205, %p206
    %p208 = scmp.ne.s32.totalorder %s197, %s200
    %p209 = scmp.eq.s32.totalorder %s19, 1
    %p210 = por %p208, %p209
    %p211 = scmp.ne.s32.totalorder %s200, %s201
    %p212 = scmp.eq.s32.totalorder %s19, 0
    %p213 = por %p211, %p212
    %p214 = scmp.ne.s32.totalorder %s200, %s201
    %p215 = scmp.eq.s32.totalorder %s20, 1
    %p216 = por %p214, %p215
    %p218 = scmp.ne.s32.totalorder %s201, %s217
    %p219 = scmp.eq.s32.totalorder %s20, 0
    %p220 = por %p218, %p219
    %p221 = scmp.le.s32.totalorder 1, %s14
    %p222 = scmp.lt.s32.totalorder %s14, 3
    %p223 = pnand %p221, %p222
    %p224 = pneg %p223
    // Predicated region
    $region9: #{tpu_custom_call.1} parent=5 // pred_check
      _
    $region10: #{tpu_custom_call.1} parent=5 // pred_check_branch
      %226 = sbr.rel (%p223) target = $region12
    $region11: #{tpu_custom_call.1} parent=5 // pred_region
      %s227 = ssub.s32 %s14, 1
      // Predicated region
      $region13: #{tpu_custom_call.1} parent=11 // pred_check
        %p228 = pneg %p61
      $region14: #{tpu_custom_call.1} parent=11 // pred_check_branch
        %230 = sbr.rel (%p228) target = $region16
      $region15: #{tpu_custom_call.1} parent=11 // pred_region
        _
      $region16: #{tpu_custom_call.1} parent=11 // pred_fallthru
        _
      // Predicated region
      $region17: #{tpu_custom_call.1} parent=11 // pred_check
        %p231 = pneg %p82
      $region18: #{tpu_custom_call.1} parent=11 // pred_check_branch
        %233 = sbr.rel (%p231) target = $region20
      $region19: #{tpu_custom_call.1} parent=11 // pred_region
        _
      $region20: #{tpu_custom_call.1} parent=11 // pred_fallthru
        _
      // Predicated region
      $region21: #{tpu_custom_call.1} parent=11 // pred_check
        %p234 = pneg %p103
      $region22: #{tpu_custom_call.1} parent=11 // pred_check_branch
        %236 = sbr.rel (%p234) target = $region24
      $region23: #{tpu_custom_call.1} parent=11 // pred_region
        _
      $region24: #{tpu_custom_call.1} parent=11 // pred_fallthru
        _
      // Predicated region
      $region25: #{tpu_custom_call.1} parent=11 // pred_check
        %p237 = pneg %p124
      $region26: #{tpu_custom_call.1} parent=11 // pred_check_branch
        %239 = sbr.rel (%p237) target = $region28
      $region27: #{tpu_custom_call.1} parent=11 // pred_region
        _
      $region28: #{tpu_custom_call.1} parent=11 // pred_fallthru
        _
      // Predicated region
      $region29: #{tpu_custom_call.1} parent=11 // pred_check
        %p240 = pneg %p145
      $region30: #{tpu_custom_call.1} parent=11 // pred_check_branch
        %242 = sbr.rel (%p240) target = $region32
      $region31: #{tpu_custom_call.1} parent=11 // pred_region
        _
      $region32: #{tpu_custom_call.1} parent=11 // pred_fallthru
        _
      // Predicated region
      $region33: #{tpu_custom_call.1} parent=11 // pred_check
        %p243 = pneg %p166
      $region34: #{tpu_custom_call.1} parent=11 // pred_check_branch
        %245 = sbr.rel (%p243) target = $region36
      $region35: #{tpu_custom_call.1} parent=11 // pred_region
        _
      $region36: #{tpu_custom_call.1} parent=11 // pred_fallthru
        _
      // Predicated region
      $region37: #{tpu_custom_call.1} parent=11 // pred_check
        %p246 = pneg %p187
      $region38: #{tpu_custom_call.1} parent=11 // pred_check_branch
        %248 = sbr.rel (%p246) target = $region40
      $region39: #{tpu_custom_call.1} parent=11 // pred_region
        _
      $region40: #{tpu_custom_call.1} parent=11 // pred_fallthru
        _
    $region12: #{tpu_custom_call.1} parent=5 // pred_fallthru
      _
    %p249 = scmp.lt.s32.totalorder %s14, 2
    // Predicated region
    $region41: #{tpu_custom_call.1} parent=5 // pred_check
      %p250 = pneg %p249
    $region42: #{tpu_custom_call.1} parent=5 // pred_check_branch
      %252 = sbr.rel (%p250) target = $region44
    $region43: #{tpu_custom_call.1} parent=5 // pred_region
      // Predicated region
      $region45: #{tpu_custom_call.1} parent=43 // pred_check
        %p253 = pneg %p34
      $region46: #{tpu_custom_call.1} parent=43 // pred_check_branch
        %255 = sbr.rel (%p253) target = $region48
      $region47: #{tpu_custom_call.1} parent=43 // pred_region
        %s256 = smul.u32 16, %s14
        %p257 = scmp.lt.s32.totalorder %s256, 31
        %s258 = scalar_select %p257, %s256, 31
        %s259 = smul.addr %s258, 8
        %s260 = scalar_lea.vmem %s0, %s259
        %s261 = smul.u32 16, %s14
      $region48: #{tpu_custom_call.1} parent=43 // pred_fallthru
        _
    $region44: #{tpu_custom_call.1} parent=5 // pred_fallthru
      _
    %p262 = scmp.le.s32.totalorder 1, %s14
    %p263 = scmp.lt.s32.totalorder %s14, 3
    %p264 = pnand %p262, %p263
    %p265 = pneg %p264
    // Predicated region
    $region49: #{tpu_custom_call.1} parent=5 // pred_check
      _
    $region50: #{tpu_custom_call.1} parent=5 // pred_check_branch
      %267 = sbr.rel (%p264) target = $region52
    $region51: #{tpu_custom_call.1} parent=5 // pred_region
      %s268 = ssub.s32 %s14, 1
      %s269 = smul.u32 16, %s19
      %p270 = scmp.lt.s32.totalorder %s269, 31
      %s271 = scalar_select %p270, %s269, 31
      %s272 = smul.addr %s271, 8
      %s273 = scalar_lea.vmem %s0, %s272
      %p274 = pneg %p40
      %p275 = pneg %p37
      %p276 = pneg %p61
      %p277 = pneg %p58
      %p278 = pneg %p82
      %p279 = pneg %p79
      %p280 = pneg %p103
      %p281 = pneg %p100
      %p282 = pneg %p124
      %p283 = pneg %p121
      %p284 = pneg %p145
      %p285 = pneg %p142
      %p286 = pneg %p166
      %p287 = pneg %p163
      %p288 = pneg %p187
      %p289 = pneg %p184
      %p290 = pneg %p213
      %p291 = pneg %p210
      %s292 = smul.u32 16, %s19
      %p293 = scmp.lt.s32.totalorder %s292, 31
      %s294 = scalar_select %p293, %s292, 31
      %s295 = smul.addr %s294, 8
      %s296 = scalar_lea.vmem %s8, %s295
      %s297 = smul.u32 16, %s19
      %p298 = scmp.lt.s32.totalorder %s297, 31
      %s299 = scalar_select %p298, %s297, 31
      %s300 = smul.addr %s299, 8
      %s301 = scalar_lea.vmem %s0, %s300
      %s302 = smul.u32 16, %s19
      %s303 = smul.u32 16, %s19
      %p304 = scmp.lt.s32.totalorder %s303, 31
      %s305 = scalar_select %p304, %s303, 31
      %s306 = smul.addr %s305, 8
      %s307 = scalar_lea.vmem %s8, %s306
      %s308 = smul.u32 16, %s19
      %v309 = vld [vmem:[%s301] sm:$0xff]
      %v310 = vld [vmem:[%s301 + $0x8] sm:$0xff]
      %v311 = vld [vmem:[%s301 + $0x10] sm:$0xff]
      %v312 = vld [vmem:[%s301 + $0x18] sm:$0xff]
      %v313 = vld [vmem:[%s301 + $0x20] sm:$0xff]
      %v314 = vld [vmem:[%s301 + $0x28] sm:$0xff]
      %v315 = vld [vmem:[%s301 + $0x30] sm:$0xff]
      %v316 = vld [vmem:[%s301 + $0x38] sm:$0xff]
      %v317 = vld [vmem:[%s301 + $0x40] sm:$0xff]
      %v318 = vld [vmem:[%s301 + $0x48] sm:$0xff]
      %v319 = vld [vmem:[%s301 + $0x50] sm:$0xff]
      %v320 = vld [vmem:[%s301 + $0x58] sm:$0xff]
      %v321 = vld [vmem:[%s301 + $0x60] sm:$0xff]
      %v322 = vld [vmem:[%s301 + $0x68] sm:$0xff]
      %v323 = vld [vmem:[%s301 + $0x70] sm:$0xff]
      %v324 = vld [vmem:[%s301 + $0x78] sm:$0xff]
      %v325 = vld [vmem:[%s1] sm:$0xff]
      %v326 = vld [vmem:[%s1 + $0x8] sm:$0xff]
      %v327 = vld [vmem:[%s1 + $0x10] sm:$0xff]
      %v328 = vld [vmem:[%s1 + $0x18] sm:$0xff]
      %v329 = vld [vmem:[%s1 + $0x20] sm:$0xff]
      %v330 = vld [vmem:[%s1 + $0x28] sm:$0xff]
      %v331 = vld [vmem:[%s1 + $0x30] sm:$0xff]
      %v332 = vld [vmem:[%s1 + $0x38] sm:$0xff]
      %v333 = vld [vmem:[%s1 + $0x40] sm:$0xff]
      %v334 = vld [vmem:[%s1 + $0x48] sm:$0xff]
      %v335 = vld [vmem:[%s1 + $0x50] sm:$0xff]
      %v336 = vld [vmem:[%s1 + $0x58] sm:$0xff]
      %v337 = vld [vmem:[%s1 + $0x60] sm:$0xff]
      %v338 = vld [vmem:[%s1 + $0x68] sm:$0xff]
      %v339 = vld [vmem:[%s1 + $0x70] sm:$0xff]
      %v340 = vld [vmem:[%s1 + $0x78] sm:$0xff]
      %v341 = vld [vmem:[%s2] sm:$0x1]
      %vm342 = vcmask 130048
      %v344 = vsel %vm342, %v309, 0
      %v347 = vsel %vm342, %v310, 0
      %v350 = vsel %vm342, %v311, 0
      %v353 = vsel %vm342, %v312, 0
      %v356 = vsel %vm342, %v313, 0
      %v359 = vsel %vm342, %v314, 0
      %v362 = vsel %vm342, %v315, 0
      %v365 = vsel %vm342, %v316, 0
      %v368 = vsel %vm342, %v317, 0
      %v371 = vsel %vm342, %v318, 0
      %v374 = vsel %vm342, %v319, 0
      %v377 = vsel %vm342, %v320, 0
      %v380 = vsel %vm342, %v321, 0
      %v383 = vsel %vm342, %v322, 0
      %v386 = vsel %vm342, %v323, 0
      %v389 = vsel %vm342, %v324, 0
      %v392 = vsel %vm342, %v325, 0
      %v395 = vsel %vm342, %v326, 0
      %v398 = vsel %vm342, %v327, 0
      %v401 = vsel %vm342, %v328, 0
      %v404 = vsel %vm342, %v329, 0
      %v407 = vsel %vm342, %v330, 0
      %v410 = vsel %vm342, %v331, 0
      %v413 = vsel %vm342, %v332, 0
      %v416 = vsel %vm342, %v333, 0
      %v419 = vsel %vm342, %v334, 0
      %v422 = vsel %vm342, %v335, 0
      %v425 = vsel %vm342, %v336, 0
      %v428 = vsel %vm342, %v337, 0
      %v431 = vsel %vm342, %v338, 0
      %v434 = vsel %vm342, %v339, 0
      %v437 = vsel %vm342, %v340, 0
      %439 = vmatpush.xpose.msra.mxu0 %v437
      %440 = vmatpush.xpose.msra.mxu0 %v434
      %441 = vmatpush.xpose.msra.mxu0 %v431
      %442 = vmatpush.xpose.msra.mxu0 %v428
      %443 = vmatpush.xpose.msra.mxu0 %v425
      %444 = vmatpush.xpose.msra.mxu0 %v422
      %445 = vmatpush.xpose.msra.mxu0 %v419
      %446 = vmatpush.xpose.msra.mxu0 %v416
      %447 = vmatpush.xpose.msra.mxu0 %v413
      %448 = vmatpush.xpose.msra.mxu0 %v410
      %449 = vmatpush.xpose.msra.mxu0 %v407
      %450 = vmatpush.xpose.msra.mxu0 %v404
      %451 = vmatpush.xpose.msra.mxu0 %v401
      %452 = vmatpush.xpose.msra.mxu0 %v398
      %453 = vmatpush.xpose.msra.mxu0 %v395
      %454 = vmatpush.xpose.msra.mxu0 %v392
      %455 = vmatmul.f32.gmra.mxu0 %v344
      %v456 = vpop.f32.mrf.mxu0
      %v457 = vadd.f32 0.0, %v456
      %458 = vmatmul.f32.gmra.mxu0 %v347
      %v459 = vpop.f32.mrf.mxu0
      %v460 = vadd.f32 0.0, %v459
      %461 = vmatmul.f32.gmra.mxu0 %v350
      %v462 = vpop.f32.mrf.mxu0
      %v463 = vadd.f32 0.0, %v462
      %464 = vmatmul.f32.gmra.mxu0 %v353
      %v465 = vpop.f32.mrf.mxu0
      %v466 = vadd.f32 0.0, %v465
      %467 = vmatmul.f32.gmra.mxu0 %v356
      %v468 = vpop.f32.mrf.mxu0
      %v469 = vadd.f32 0.0, %v468
      %470 = vmatmul.f32.gmra.mxu0 %v359
      %v471 = vpop.f32.mrf.mxu0
      %v472 = vadd.f32 0.0, %v471
      %473 = vmatmul.f32.gmra.mxu0 %v362
      %v474 = vpop.f32.mrf.mxu0
      %v475 = vadd.f32 0.0, %v474
      %476 = vmatmul.f32.gmra.mxu0 %v365
      %v477 = vpop.f32.mrf.mxu0
      %v478 = vadd.f32 0.0, %v477
      %479 = vmatmul.f32.gmra.mxu0 %v368
      %v480 = vpop.f32.mrf.mxu0
      %v481 = vadd.f32 0.0, %v480
      %482 = vmatmul.f32.gmra.mxu0 %v371
      %v483 = vpop.f32.mrf.mxu0
      %v484 = vadd.f32 0.0, %v483
      %485 = vmatmul.f32.gmra.mxu0 %v374
      %v486 = vpop.f32.mrf.mxu0
      %v487 = vadd.f32 0.0, %v486
      %488 = vmatmul.f32.gmra.mxu0 %v377
      %v489 = vpop.f32.mrf.mxu0
      %v490 = vadd.f32 0.0, %v489
      %491 = vmatmul.f32.gmra.mxu0 %v380
      %v492 = vpop.f32.mrf.mxu0
      %v493 = vadd.f32 0.0, %v492
      %494 = vmatmul.f32.gmra.mxu0 %v383
      %v495 = vpop.f32.mrf.mxu0
      %v496 = vadd.f32 0.0, %v495
      %497 = vmatmul.f32.gmra.mxu0 %v386
      %v498 = vpop.f32.mrf.mxu0
      %v499 = vadd.f32 0.0, %v498
      %500 = vmatmul.f32.gmra.mxu0 %v389
      %v501 = vpop.f32.mrf.mxu0
      %v502 = vadd.f32 0.0, %v501
      %503 = vdwg.mxu0
      %v504 = vmul.f32 %v457, -2.0
      %v505 = vmul.f32 %v460, -2.0
      %v506 = vmul.f32 %v463, -2.0
      %v507 = vmul.f32 %v466, -2.0
      %v508 = vmul.f32 %v469, -2.0
      %v509 = vmul.f32 %v472, -2.0
      %v510 = vmul.f32 %v475, -2.0
      %v511 = vmul.f32 %v478, -2.0
      %v512 = vmul.f32 %v481, -2.0
      %v513 = vmul.f32 %v484, -2.0
      %v514 = vmul.f32 %v487, -2.0
      %v515 = vmul.f32 %v490, -2.0
      %v516 = vmul.f32 %v493, -2.0
      %v517 = vmul.f32 %v496, -2.0
      %v518 = vmul.f32 %v499, -2.0
      %v519 = vmul.f32 %v502, -2.0
      %v521 = vperm.slane %v341, 0
      %v523 = vadd.f32 %v504, %v521
      %v524 = vadd.f32 %v505, %v521
      %v525 = vadd.f32 %v506, %v521
      %v526 = vadd.f32 %v507, %v521
      %v527 = vadd.f32 %v508, %v521
      %v528 = vadd.f32 %v509, %v521
      %v529 = vadd.f32 %v510, %v521
      %v530 = vadd.f32 %v511, %v521
      %v531 = vadd.f32 %v512, %v521
      %v532 = vadd.f32 %v513, %v521
      %v533 = vadd.f32 %v514, %v521
      %v534 = vadd.f32 %v515, %v521
      %v535 = vadd.f32 %v516, %v521
      %v536 = vadd.f32 %v517, %v521
      %v537 = vadd.f32 %v518, %v521
      %v538 = vadd.f32 %v519, %v521
      %539 = vmin.xlane.f32.xlu0 %v523
      %v540 = vpop.xlane.xlu0 %539
      %541 = vmin.xlane.f32.xlu0 %v524
      %v542 = vpop.xlane.xlu0 %541
      %543 = vmin.xlane.f32.xlu0 %v525
      %v544 = vpop.xlane.xlu0 %543
      %545 = vmin.xlane.f32.xlu0 %v526
      %v546 = vpop.xlane.xlu0 %545
      %547 = vmin.xlane.f32.xlu0 %v527
      %v548 = vpop.xlane.xlu0 %547
      %549 = vmin.xlane.f32.xlu0 %v528
      %v550 = vpop.xlane.xlu0 %549
      %551 = vmin.xlane.f32.xlu0 %v529
      %v552 = vpop.xlane.xlu0 %551
      %553 = vmin.xlane.f32.xlu0 %v530
      %v554 = vpop.xlane.xlu0 %553
      %555 = vmin.xlane.f32.xlu0 %v531
      %v556 = vpop.xlane.xlu0 %555
      %557 = vmin.xlane.f32.xlu0 %v532
      %v558 = vpop.xlane.xlu0 %557
      %559 = vmin.xlane.f32.xlu0 %v533
      %v560 = vpop.xlane.xlu0 %559
      %561 = vmin.xlane.f32.xlu0 %v534
      %v562 = vpop.xlane.xlu0 %561
      %563 = vmin.xlane.f32.xlu0 %v535
      %v564 = vpop.xlane.xlu0 %563
      %565 = vmin.xlane.f32.xlu0 %v536
      %v566 = vpop.xlane.xlu0 %565
      %567 = vmin.xlane.f32.xlu0 %v537
      %v568 = vpop.xlane.xlu0 %567
      %569 = vmin.xlane.f32.xlu0 %v538
      %v570 = vpop.xlane.xlu0 %569
      %v571 = vlaneseq
      %v572 = vand.u32 %v571, 127
      %vm573 = vcmp.le.f32.partialorder %v523, %v540
      %vm574 = vcmp.le.f32.partialorder %v524, %v542
      %vm575 = vcmp.le.f32.partialorder %v525, %v544
      %vm576 = vcmp.le.f32.partialorder %v526, %v546
      %vm577 = vcmp.le.f32.partialorder %v527, %v548
      %vm578 = vcmp.le.f32.partialorder %v528, %v550
      %vm579 = vcmp.le.f32.partialorder %v529, %v552
      %vm580 = vcmp.le.f32.partialorder %v530, %v554
      %vm581 = vcmp.le.f32.partialorder %v531, %v556
      %vm582 = vcmp.le.f32.partialorder %v532, %v558
      %vm583 = vcmp.le.f32.partialorder %v533, %v560
      %vm584 = vcmp.le.f32.partialorder %v534, %v562
      %vm585 = vcmp.le.f32.partialorder %v535, %v564
      %vm586 = vcmp.le.f32.partialorder %v536, %v566
      %vm587 = vcmp.le.f32.partialorder %v537, %v568
      %vm588 = vcmp.le.f32.partialorder %v538, %v570
      %v589 = vsel %vm573, %v572, 128
      %v590 = vsel %vm574, %v572, 128
      %v591 = vsel %vm575, %v572, 128
      %v592 = vsel %vm576, %v572, 128
      %v593 = vsel %vm577, %v572, 128
      %v594 = vsel %vm578, %v572, 128
      %v595 = vsel %vm579, %v572, 128
      %v596 = vsel %vm580, %v572, 128
      %v597 = vsel %vm581, %v572, 128
      %v598 = vsel %vm582, %v572, 128
      %v599 = vsel %vm583, %v572, 128
      %v600 = vsel %vm584, %v572, 128
      %v601 = vsel %vm585, %v572, 128
      %v602 = vsel %vm586, %v572, 128
      %v603 = vsel %vm587, %v572, 128
      %v604 = vsel %vm588, %v572, 128
      %v605 = vand.u32 %v589, 65535
      %v606 = vshra.s32 %v589, 16
      %v607 = vcvt.s32.f32 %v605
      %v608 = vcvt.s32.f32 %v606
      %609 = vmin.xlane.f32.xlu0 %v608
      %v610 = vpop.xlane.xlu0 %609
      %vm611 = vcmp.eq.f32.partialorder %v608, %v610
      %v612 = vsel %vm611, %v607, inf
      %613 = vmin.xlane.f32.xlu0 %v612
      %v614 = vpop.xlane.xlu0 %613
      %v615 = vcvt.f32.s32 %v614
      %v616 = vcvt.f32.s32 %v610
      %v617 = vshll.u32 %v616, 16
      %v618 = vadd.s32 %v617, %v615
      %v619 = vand.u32 %v590, 65535
      %v620 = vshra.s32 %v590, 16
      %v621 = vcvt.s32.f32 %v619
      %v622 = vcvt.s32.f32 %v620
      %623 = vmin.xlane.f32.xlu0 %v622
      %v624 = vpop.xlane.xlu0 %623
      %vm625 = vcmp.eq.f32.partialorder %v622, %v624
      %v626 = vsel %vm625, %v621, inf
      %627 = vmin.xlane.f32.xlu0 %v626
      %v628 = vpop.xlane.xlu0 %627
      %v629 = vcvt.f32.s32 %v628
      %v630 = vcvt.f32.s32 %v624
      %v631 = vshll.u32 %v630, 16
      %v632 = vadd.s32 %v631, %v629
      %v633 = vand.u32 %v591, 65535
      %v634 = vshra.s32 %v591, 16
      %v635 = vcvt.s32.f32 %v633
      %v636 = vcvt.s32.f32 %v634
      %637 = vmin.xlane.f32.xlu0 %v636
      %v638 = vpop.xlane.xlu0 %637
      %vm639 = vcmp.eq.f32.partialorder %v636, %v638
      %v640 = vsel %vm639, %v635, inf
      %641 = vmin.xlane.f32.xlu0 %v640
      %v642 = vpop.xlane.xlu0 %641
      %v643 = vcvt.f32.s32 %v642
      %v644 = vcvt.f32.s32 %v638
      %v645 = vshll.u32 %v644, 16
      %v646 = vadd.s32 %v645, %v643
      %v647 = vand.u32 %v592, 65535
      %v648 = vshra.s32 %v592, 16
      %v649 = vcvt.s32.f32 %v647
      %v650 = vcvt.s32.f32 %v648
      %651 = vmin.xlane.f32.xlu0 %v650
      %v652 = vpop.xlane.xlu0 %651
      %vm653 = vcmp.eq.f32.partialorder %v650, %v652
      %v654 = vsel %vm653, %v649, inf
      %655 = vmin.xlane.f32.xlu0 %v654
      %v656 = vpop.xlane.xlu0 %655
      %v657 = vcvt.f32.s32 %v656
      %v658 = vcvt.f32.s32 %v652
      %v659 = vshll.u32 %v658, 16
      %v660 = vadd.s32 %v659, %v657
      %v661 = vand.u32 %v593, 65535
      %v662 = vshra.s32 %v593, 16
      %v663 = vcvt.s32.f32 %v661
      %v664 = vcvt.s32.f32 %v662
      %665 = vmin.xlane.f32.xlu0 %v664
      %v666 = vpop.xlane.xlu0 %665
      %vm667 = vcmp.eq.f32.partialorder %v664, %v666
      %v668 = vsel %vm667, %v663, inf
      %669 = vmin.xlane.f32.xlu0 %v668
      %v670 = vpop.xlane.xlu0 %669
      %v671 = vcvt.f32.s32 %v670
      %v672 = vcvt.f32.s32 %v666
      %v673 = vshll.u32 %v672, 16
      %v674 = vadd.s32 %v673, %v671
      %v675 = vand.u32 %v594, 65535
      %v676 = vshra.s32 %v594, 16
      %v677 = vcvt.s32.f32 %v675
      %v678 = vcvt.s32.f32 %v676
      %679 = vmin.xlane.f32.xlu0 %v678
      %v680 = vpop.xlane.xlu0 %679
      %vm681 = vcmp.eq.f32.partialorder %v678, %v680
      %v682 = vsel %vm681, %v677, inf
      %683 = vmin.xlane.f32.xlu0 %v682
      %v684 = vpop.xlane.xlu0 %683
      %v685 = vcvt.f32.s32 %v684
      %v686 = vcvt.f32.s32 %v680
      %v687 = vshll.u32 %v686, 16
      %v688 = vadd.s32 %v687, %v685
      %v689 = vand.u32 %v595, 65535
      %v690 = vshra.s32 %v595, 16
      %v691 = vcvt.s32.f32 %v689
      %v692 = vcvt.s32.f32 %v690
      %693 = vmin.xlane.f32.xlu0 %v692
      %v694 = vpop.xlane.xlu0 %693
      %vm695 = vcmp.eq.f32.partialorder %v692, %v694
      %v696 = vsel %vm695, %v691, inf
      %697 = vmin.xlane.f32.xlu0 %v696
      %v698 = vpop.xlane.xlu0 %697
      %v699 = vcvt.f32.s32 %v698
      %v700 = vcvt.f32.s32 %v694
      %v701 = vshll.u32 %v700, 16
      %v702 = vadd.s32 %v701, %v699
      %v703 = vand.u32 %v596, 65535
      %v704 = vshra.s32 %v596, 16
      %v705 = vcvt.s32.f32 %v703
      %v706 = vcvt.s32.f32 %v704
      %707 = vmin.xlane.f32.xlu0 %v706
      %v708 = vpop.xlane.xlu0 %707
      %vm709 = vcmp.eq.f32.partialorder %v706, %v708
      %v710 = vsel %vm709, %v705, inf
      %711 = vmin.xlane.f32.xlu0 %v710
      %v712 = vpop.xlane.xlu0 %711
      %v713 = vcvt.f32.s32 %v712
      %v714 = vcvt.f32.s32 %v708
      %v715 = vshll.u32 %v714, 16
      %v716 = vadd.s32 %v715, %v713
      %v717 = vand.u32 %v597, 65535
      %v718 = vshra.s32 %v597, 16
      %v719 = vcvt.s32.f32 %v717
      %v720 = vcvt.s32.f32 %v718
      %721 = vmin.xlane.f32.xlu0 %v720
      %v722 = vpop.xlane.xlu0 %721
      %vm723 = vcmp.eq.f32.partialorder %v720, %v722
      %v724 = vsel %vm723, %v719, inf
      %725 = vmin.xlane.f32.xlu0 %v724
      %v726 = vpop.xlane.xlu0 %725
      %v727 = vcvt.f32.s32 %v726
      %v728 = vcvt.f32.s32 %v722
      %v729 = vshll.u32 %v728, 16
      %v730 = vadd.s32 %v729, %v727
      %v731 = vand.u32 %v598, 65535
      %v732 = vshra.s32 %v598, 16
      %v733 = vcvt.s32.f32 %v731
      %v734 = vcvt.s32.f32 %v732
      %735 = vmin.xlane.f32.xlu0 %v734
      %v736 = vpop.xlane.xlu0 %735
      %vm737 = vcmp.eq.f32.partialorder %v734, %v736
      %v738 = vsel %vm737, %v733, inf
      %739 = vmin.xlane.f32.xlu0 %v738
      %v740 = vpop.xlane.xlu0 %739
      %v741 = vcvt.f32.s32 %v740
      %v742 = vcvt.f32.s32 %v736
      %v743 = vshll.u32 %v742, 16
      %v744 = vadd.s32 %v743, %v741
      %v745 = vand.u32 %v599, 65535
      %v746 = vshra.s32 %v599, 16
      %v747 = vcvt.s32.f32 %v745
      %v748 = vcvt.s32.f32 %v746
      %749 = vmin.xlane.f32.xlu0 %v748
      %v750 = vpop.xlane.xlu0 %749
      %vm751 = vcmp.eq.f32.partialorder %v748, %v750
      %v752 = vsel %vm751, %v747, inf
      %753 = vmin.xlane.f32.xlu0 %v752
      %v754 = vpop.xlane.xlu0 %753
      %v755 = vcvt.f32.s32 %v754
      %v756 = vcvt.f32.s32 %v750
      %v757 = vshll.u32 %v756, 16
      %v758 = vadd.s32 %v757, %v755
      %v759 = vand.u32 %v600, 65535
      %v760 = vshra.s32 %v600, 16
      %v761 = vcvt.s32.f32 %v759
      %v762 = vcvt.s32.f32 %v760
      %763 = vmin.xlane.f32.xlu0 %v762
      %v764 = vpop.xlane.xlu0 %763
      %vm765 = vcmp.eq.f32.partialorder %v762, %v764
      %v766 = vsel %vm765, %v761, inf
      %767 = vmin.xlane.f32.xlu0 %v766
      %v768 = vpop.xlane.xlu0 %767
      %v769 = vcvt.f32.s32 %v768
      %v770 = vcvt.f32.s32 %v764
      %v771 = vshll.u32 %v770, 16
      %v772 = vadd.s32 %v771, %v769
      %v773 = vand.u32 %v601, 65535
      %v774 = vshra.s32 %v601, 16
      %v775 = vcvt.s32.f32 %v773
      %v776 = vcvt.s32.f32 %v774
      %777 = vmin.xlane.f32.xlu0 %v776
      %v778 = vpop.xlane.xlu0 %777
      %vm779 = vcmp.eq.f32.partialorder %v776, %v778
      %v780 = vsel %vm779, %v775, inf
      %781 = vmin.xlane.f32.xlu0 %v780
      %v782 = vpop.xlane.xlu0 %781
      %v783 = vcvt.f32.s32 %v782
      %v784 = vcvt.f32.s32 %v778
      %v785 = vshll.u32 %v784, 16
      %v786 = vadd.s32 %v785, %v783
      %v787 = vand.u32 %v602, 65535
      %v788 = vshra.s32 %v602, 16
      %v789 = vcvt.s32.f32 %v787
      %v790 = vcvt.s32.f32 %v788
      %791 = vmin.xlane.f32.xlu0 %v790
      %v792 = vpop.xlane.xlu0 %791
      %vm793 = vcmp.eq.f32.partialorder %v790, %v792
      %v794 = vsel %vm793, %v789, inf
      %795 = vmin.xlane.f32.xlu0 %v794
      %v796 = vpop.xlane.xlu0 %795
      %v797 = vcvt.f32.s32 %v796
      %v798 = vcvt.f32.s32 %v792
      %v799 = vshll.u32 %v798, 16
      %v800 = vadd.s32 %v799, %v797
      %v801 = vand.u32 %v603, 65535
      %v802 = vshra.s32 %v603, 16
      %v803 = vcvt.s32.f32 %v801
      %v804 = vcvt.s32.f32 %v802
      %805 = vmin.xlane.f32.xlu0 %v804
      %v806 = vpop.xlane.xlu0 %805
      %vm807 = vcmp.eq.f32.partialorder %v804, %v806
      %v808 = vsel %vm807, %v803, inf
      %809 = vmin.xlane.f32.xlu0 %v808
      %v810 = vpop.xlane.xlu0 %809
      %v811 = vcvt.f32.s32 %v810
      %v812 = vcvt.f32.s32 %v806
      %v813 = vshll.u32 %v812, 16
      %v814 = vadd.s32 %v813, %v811
      %v815 = vand.u32 %v604, 65535
      %v816 = vshra.s32 %v604, 16
      %v817 = vcvt.s32.f32 %v815
      %v818 = vcvt.s32.f32 %v816
      %819 = vmin.xlane.f32.xlu0 %v818
      %v820 = vpop.xlane.xlu0 %819
      %vm821 = vcmp.eq.f32.partialorder %v818, %v820
      %v822 = vsel %vm821, %v817, inf
      %823 = vmin.xlane.f32.xlu0 %v822
      %v824 = vpop.xlane.xlu0 %823
      %v825 = vcvt.f32.s32 %v824
      %v826 = vcvt.f32.s32 %v820
      %v827 = vshll.u32 %v826, 16
      %v828 = vadd.s32 %v827, %v825
      %vm829 = vcmp.eq.s32.totalorder %v572, %v618
      %vm830 = vcmp.eq.s32.totalorder %v572, %v632
      %vm831 = vcmp.eq.s32.totalorder %v572, %v646
      %vm832 = vcmp.eq.s32.totalorder %v572, %v660
      %vm833 = vcmp.eq.s32.totalorder %v572, %v674
      %vm834 = vcmp.eq.s32.totalorder %v572, %v688
      %vm835 = vcmp.eq.s32.totalorder %v572, %v702
      %vm836 = vcmp.eq.s32.totalorder %v572, %v716
      %vm837 = vcmp.eq.s32.totalorder %v572, %v730
      %vm838 = vcmp.eq.s32.totalorder %v572, %v744
      %vm839 = vcmp.eq.s32.totalorder %v572, %v758
      %vm840 = vcmp.eq.s32.totalorder %v572, %v772
      %vm841 = vcmp.eq.s32.totalorder %v572, %v786
      %vm842 = vcmp.eq.s32.totalorder %v572, %v800
      %vm843 = vcmp.eq.s32.totalorder %v572, %v814
      %vm844 = vcmp.eq.s32.totalorder %v572, %v828
      %v845 = vsel %vm829, 1, 0
      %v846 = vsel %vm830, 1, 0
      %v847 = vsel %vm831, 1, 0
      %v848 = vsel %vm832, 1, 0
      %v849 = vsel %vm833, 1, 0
      %v850 = vsel %vm834, 1, 0
      %v851 = vsel %vm835, 1, 0
      %v852 = vsel %vm836, 1, 0
      %v853 = vsel %vm837, 1, 0
      %v854 = vsel %vm838, 1, 0
      %v855 = vsel %vm839, 1, 0
      %v856 = vsel %vm840, 1, 0
      %v857 = vsel %vm841, 1, 0
      %v858 = vsel %vm842, 1, 0
      %v859 = vsel %vm843, 1, 0
      %v860 = vsel %vm844, 1, 0
      %v861 = vcvt.s32.f32 %v845
      %v862 = vcvt.s32.f32 %v846
      %v863 = vcvt.s32.f32 %v847
      %v864 = vcvt.s32.f32 %v848
      %v865 = vcvt.s32.f32 %v849
      %v866 = vcvt.s32.f32 %v850
      %v867 = vcvt.s32.f32 %v851
      %v868 = vcvt.s32.f32 %v852
      %v869 = vcvt.s32.f32 %v853
      %v870 = vcvt.s32.f32 %v854
      %v871 = vcvt.s32.f32 %v855
      %v872 = vcvt.s32.f32 %v856
      %v873 = vcvt.s32.f32 %v857
      %v874 = vcvt.s32.f32 %v858
      %v875 = vcvt.s32.f32 %v859
      %v876 = vcvt.s32.f32 %v860
      %877 = vmatpush.msra.mxu0 %v340
      %878 = vmatpush.msra.mxu0 %v339
      %879 = vmatpush.msra.mxu0 %v338
      %880 = vmatpush.msra.mxu0 %v337
      %881 = vmatpush.msra.mxu0 %v336
      %882 = vmatpush.msra.mxu0 %v335
      %883 = vmatpush.msra.mxu0 %v334
      %884 = vmatpush.msra.mxu0 %v333
      %885 = vmatpush.msra.mxu0 %v332
      %886 = vmatpush.msra.mxu0 %v331
      %887 = vmatpush.msra.mxu0 %v330
      %888 = vmatpush.msra.mxu0 %v329
      %889 = vmatpush.msra.mxu0 %v328
      %890 = vmatpush.msra.mxu0 %v327
      %891 = vmatpush.msra.mxu0 %v326
      %892 = vmatpush.msra.mxu0 %v325
      %893 = vmatmul.f32.gmra.mxu0 %v861
      %v894 = vpop.f32.mrf.mxu0
      %v895 = vadd.f32 0.0, %v894
      %896 = vmatmul.f32.gmra.mxu0 %v862
      %v897 = vpop.f32.mrf.mxu0
      %v898 = vadd.f32 0.0, %v897
      %899 = vmatmul.f32.gmra.mxu0 %v863
      %v900 = vpop.f32.mrf.mxu0
      %v901 = vadd.f32 0.0, %v900
      %902 = vmatmul.f32.gmra.mxu0 %v864
      %v903 = vpop.f32.mrf.mxu0
      %v904 = vadd.f32 0.0, %v903
      %905 = vmatmul.f32.gmra.mxu0 %v865
      %v906 = vpop.f32.mrf.mxu0
      %v907 = vadd.f32 0.0, %v906
      %908 = vmatmul.f32.gmra.mxu0 %v866
      %v909 = vpop.f32.mrf.mxu0
      %v910 = vadd.f32 0.0, %v909
      %911 = vmatmul.f32.gmra.mxu0 %v867
      %v912 = vpop.f32.mrf.mxu0
      %v913 = vadd.f32 0.0, %v912
      %914 = vmatmul.f32.gmra.mxu0 %v868
      %v915 = vpop.f32.mrf.mxu0
      %v916 = vadd.f32 0.0, %v915
      %917 = vmatmul.f32.gmra.mxu0 %v869
      %v918 = vpop.f32.mrf.mxu0
      %v919 = vadd.f32 0.0, %v918
      %920 = vmatmul.f32.gmra.mxu0 %v870
      %v921 = vpop.f32.mrf.mxu0
      %v922 = vadd.f32 0.0, %v921
      %923 = vmatmul.f32.gmra.mxu0 %v871
      %v924 = vpop.f32.mrf.mxu0
      %v925 = vadd.f32 0.0, %v924
      %926 = vmatmul.f32.gmra.mxu0 %v872
      %v927 = vpop.f32.mrf.mxu0
      %v928 = vadd.f32 0.0, %v927
      %929 = vmatmul.f32.gmra.mxu0 %v873
      %v930 = vpop.f32.mrf.mxu0
      %v931 = vadd.f32 0.0, %v930
      %932 = vmatmul.f32.gmra.mxu0 %v874
      %v933 = vpop.f32.mrf.mxu0
      %v934 = vadd.f32 0.0, %v933
      %935 = vmatmul.f32.gmra.mxu0 %v875
      %v936 = vpop.f32.mrf.mxu0
      %v937 = vadd.f32 0.0, %v936
      %938 = vmatmul.f32.gmra.mxu0 %v876
      %v939 = vpop.f32.mrf.mxu0
      %v940 = vadd.f32 0.0, %v939
      %941 = vdwg.mxu0
      %v942 = vld [vmem:[%s7] sm:$0xff]
      %v943 = vld [vmem:[%s4] sm:$0xff]
      %v944 = vld [vmem:[%s4 + $0x8] sm:$0xff]
      %v945 = vld [vmem:[%s4 + $0x10] sm:$0xff]
      %v946 = vld [vmem:[%s4 + $0x18] sm:$0xff]
      %v947 = vld [vmem:[%s4 + $0x20] sm:$0xff]
      %v948 = vld [vmem:[%s4 + $0x28] sm:$0xff]
      %v949 = vld [vmem:[%s4 + $0x30] sm:$0xff]
      %v950 = vld [vmem:[%s4 + $0x38] sm:$0xff]
      %v951 = vld [vmem:[%s4 + $0x40] sm:$0xff]
      %v952 = vld [vmem:[%s4 + $0x48] sm:$0xff]
      %v953 = vld [vmem:[%s4 + $0x50] sm:$0xff]
      %v954 = vld [vmem:[%s4 + $0x58] sm:$0xff]
      %v955 = vld [vmem:[%s4 + $0x60] sm:$0xff]
      %v956 = vld [vmem:[%s4 + $0x68] sm:$0xff]
      %v957 = vld [vmem:[%s4 + $0x70] sm:$0xff]
      %v958 = vld [vmem:[%s4 + $0x78] sm:$0xff]
      %v959 = vld [vmem:[%s3] sm:$0xff]
      %v960 = vld [vmem:[%s3 + $0x8] sm:$0xff]
      %v961 = vperm.slane %v942, 0
      %v963 = vsel %vm342, %v895, 0
      %v966 = vsel %vm342, %v898, 0
      %v969 = vsel %vm342, %v901, 0
      %v972 = vsel %vm342, %v904, 0
      %v975 = vsel %vm342, %v907, 0
      %v978 = vsel %vm342, %v910, 0
      %v981 = vsel %vm342, %v913, 0
      %v984 = vsel %vm342, %v916, 0
      %v987 = vsel %vm342, %v919, 0
      %v990 = vsel %vm342, %v922, 0
      %v993 = vsel %vm342, %v925, 0
      %v996 = vsel %vm342, %v928, 0
      %v999 = vsel %vm342, %v931, 0
      %v1002 = vsel %vm342, %v934, 0
      %v1005 = vsel %vm342, %v937, 0
      %v1008 = vsel %vm342, %v940, 0
      %1010 = vmatpush.msra.mxu0 0.0
      %1011 = vmatpush.msra.mxu0 0.0
      %1012 = vmatpush.msra.mxu0 0.0
      %1013 = vmatpush.msra.mxu0 0.0
      %1014 = vmatpush.msra.mxu0 0.0
      %1015 = vmatpush.msra.mxu0 0.0
      %1016 = vmatpush.msra.mxu0 0.0
      %1017 = vmatpush.msra.mxu0 0.0
      %1018 = vmatpush.msra.mxu0 0.0
      %1019 = vmatpush.msra.mxu0 0.0
      %1020 = vmatpush.msra.mxu0 0.0
      %1021 = vmatpush.msra.mxu0 0.0
      %1022 = vmatpush.msra.mxu0 0.0
      %1023 = vmatpush.msra.mxu0 0.0
      %1024 = vmatpush.msra.mxu0 %v960
      %1025 = vmatpush.msra.mxu0 %v959
      %1026 = vmatmul.f32.gmra.mxu0 %v963
      %v1027 = vpop.f32.mrf.mxu0
      %v1028 = vadd.f32 %v961, %v1027
      %1029 = vmatmul.f32.gmra.mxu0 %v966
      %v1030 = vpop.f32.mrf.mxu0
      %v1031 = vadd.f32 %v961, %v1030
      %1032 = vmatmul.f32.gmra.mxu0 %v969
      %v1033 = vpop.f32.mrf.mxu0
      %v1034 = vadd.f32 %v961, %v1033
      %1035 = vmatmul.f32.gmra.mxu0 %v972
      %v1036 = vpop.f32.mrf.mxu0
      %v1037 = vadd.f32 %v961, %v1036
      %1038 = vmatmul.f32.gmra.mxu0 %v975
      %v1039 = vpop.f32.mrf.mxu0
      %v1040 = vadd.f32 %v961, %v1039
      %1041 = vmatmul.f32.gmra.mxu0 %v978
      %v1042 = vpop.f32.mrf.mxu0
      %v1043 = vadd.f32 %v961, %v1042
      %1044 = vmatmul.f32.gmra.mxu0 %v981
      %v1045 = vpop.f32.mrf.mxu0
      %v1046 = vadd.f32 %v961, %v1045
      %1047 = vmatmul.f32.gmra.mxu0 %v984
      %v1048 = vpop.f32.mrf.mxu0
      %v1049 = vadd.f32 %v961, %v1048
      %1050 = vmatmul.f32.gmra.mxu0 %v987
      %v1051 = vpop.f32.mrf.mxu0
      %v1052 = vadd.f32 %v961, %v1051
      %1053 = vmatmul.f32.gmra.mxu0 %v990
      %v1054 = vpop.f32.mrf.mxu0
      %v1055 = vadd.f32 %v961, %v1054
      %1056 = vmatmul.f32.gmra.mxu0 %v993
      %v1057 = vpop.f32.mrf.mxu0
      %v1058 = vadd.f32 %v961, %v1057
      %1059 = vmatmul.f32.gmra.mxu0 %v996
      %v1060 = vpop.f32.mrf.mxu0
      %v1061 = vadd.f32 %v961, %v1060
      %1062 = vmatmul.f32.gmra.mxu0 %v999
      %v1063 = vpop.f32.mrf.mxu0
      %v1064 = vadd.f32 %v961, %v1063
      %1065 = vmatmul.f32.gmra.mxu0 %v1002
      %v1066 = vpop.f32.mrf.mxu0
      %v1067 = vadd.f32 %v961, %v1066
      %1068 = vmatmul.f32.gmra.mxu0 %v1005
      %v1069 = vpop.f32.mrf.mxu0
      %v1070 = vadd.f32 %v961, %v1069
      %1071 = vmatmul.f32.gmra.mxu0 %v1008
      %v1072 = vpop.f32.mrf.mxu0
      %v1073 = vadd.f32 %v961, %v1072
      %1074 = vdwg.mxu0
      %v1075 = vtanh.pop %v1028
      %v1076 = vtanh.pop %v1031
      %v1077 = vtanh.pop %v1034
      %v1078 = vtanh.pop %v1037
      %v1079 = vtanh.pop %v1040
      %v1080 = vtanh.pop %v1043
      %v1081 = vtanh.pop %v1046
      %v1082 = vtanh.pop %v1049
      %v1083 = vtanh.pop %v1052
      %v1084 = vtanh.pop %v1055
      %v1085 = vtanh.pop %v1058
      %v1086 = vtanh.pop %v1061
      %v1087 = vtanh.pop %v1064
      %v1088 = vtanh.pop %v1067
      %v1089 = vtanh.pop %v1070
      %v1090 = vtanh.pop %v1073
      %v1091 = vperm.slane %v942, 1
      %vm1092 = vcmask 261120
      %v1094 = vsel %vm1092, %v1075, 0
      %v1097 = vsel %vm1092, %v1076, 0
      %v1100 = vsel %vm1092, %v1077, 0
      %v1103 = vsel %vm1092, %v1078, 0
      %v1106 = vsel %vm1092, %v1079, 0
      %v1109 = vsel %vm1092, %v1080, 0
      %v1112 = vsel %vm1092, %v1081, 0
      %v1115 = vsel %vm1092, %v1082, 0
      %v1118 = vsel %vm1092, %v1083, 0
      %v1121 = vsel %vm1092, %v1084, 0
      %v1124 = vsel %vm1092, %v1085, 0
      %v1127 = vsel %vm1092, %v1086, 0
      %v1130 = vsel %vm1092, %v1087, 0
      %v1133 = vsel %vm1092, %v1088, 0
      %v1136 = vsel %vm1092, %v1089, 0
      %v1139 = vsel %vm1092, %v1090, 0
      %1141 = vmatpush.msra.mxu0 0.0
      %1142 = vmatpush.msra.mxu0 0.0
      %1143 = vmatpush.msra.mxu0 0.0
      %1144 = vmatpush.msra.mxu0 0.0
      %1145 = vmatpush.msra.mxu0 0.0
      %1146 = vmatpush.msra.mxu0 0.0
      %1147 = vmatpush.msra.mxu0 0.0
      %1148 = vmatpush.msra.mxu0 0.0
      %1149 = vmatpush.msra.mxu0 0.0
      %1150 = vmatpush.msra.mxu0 0.0
      %1151 = vmatpush.msra.mxu0 0.0
      %1152 = vmatpush.msra.mxu0 0.0
      %1153 = vmatpush.msra.mxu0 %v946
      %1154 = vmatpush.msra.mxu0 %v945
      %1155 = vmatpush.msra.mxu0 %v944
      %1156 = vmatpush.msra.mxu0 %v943
      %1157 = vmatmul.f32.gmra.mxu0 %v1094
      %v1158 = vpop.f32.mrf.mxu0
      %v1159 = vadd.f32 %v1091, %v1158
      %1160 = vmatmul.f32.gmra.mxu0 %v1097
      %v1161 = vpop.f32.mrf.mxu0
      %v1162 = vadd.f32 %v1091, %v1161
      %1163 = vmatmul.f32.gmra.mxu0 %v1100
      %v1164 = vpop.f32.mrf.mxu0
      %v1165 = vadd.f32 %v1091, %v1164
      %1166 = vmatmul.f32.gmra.mxu0 %v1103
      %v1167 = vpop.f32.mrf.mxu0
      %v1168 = vadd.f32 %v1091, %v1167
      %1169 = vmatmul.f32.gmra.mxu0 %v1106
      %v1170 = vpop.f32.mrf.mxu0
      %v1171 = vadd.f32 %v1091, %v1170
      %1172 = vmatmul.f32.gmra.mxu0 %v1109
      %v1173 = vpop.f32.mrf.mxu0
      %v1174 = vadd.f32 %v1091, %v1173
      %1175 = vmatmul.f32.gmra.mxu0 %v1112
      %v1176 = vpop.f32.mrf.mxu0
      %v1177 = vadd.f32 %v1091, %v1176
      %1178 = vmatmul.f32.gmra.mxu0 %v1115
      %v1179 = vpop.f32.mrf.mxu0
      %v1180 = vadd.f32 %v1091, %v1179
      %1181 = vmatmul.f32.gmra.mxu0 %v1118
      %v1182 = vpop.f32.mrf.mxu0
      %v1183 = vadd.f32 %v1091, %v1182
      %1184 = vmatmul.f32.gmra.mxu0 %v1121
      %v1185 = vpop.f32.mrf.mxu0
      %v1186 = vadd.f32 %v1091, %v1185
      %1187 = vmatmul.f32.gmra.mxu0 %v1124
      %v1188 = vpop.f32.mrf.mxu0
      %v1189 = vadd.f32 %v1091, %v1188
      %1190 = vmatmul.f32.gmra.mxu0 %v1127
      %v1191 = vpop.f32.mrf.mxu0
      %v1192 = vadd.f32 %v1091, %v1191
      %1193 = vmatmul.f32.gmra.mxu0 %v1130
      %v1194 = vpop.f32.mrf.mxu0
      %v1195 = vadd.f32 %v1091, %v1194
      %1196 = vmatmul.f32.gmra.mxu0 %v1133
      %v1197 = vpop.f32.mrf.mxu0
      %v1198 = vadd.f32 %v1091, %v1197
      %1199 = vmatmul.f32.gmra.mxu0 %v1136
      %v1200 = vpop.f32.mrf.mxu0
      %v1201 = vadd.f32 %v1091, %v1200
      %1202 = vmatmul.f32.gmra.mxu0 %v1139
      %v1203 = vpop.f32.mrf.mxu0
      %v1204 = vadd.f32 %v1091, %v1203
      %1205 = vdwg.mxu0
      %v1206 = vtanh.pop %v1159
      %v1207 = vtanh.pop %v1162
      %v1208 = vtanh.pop %v1165
      %v1209 = vtanh.pop %v1168
      %v1210 = vtanh.pop %v1171
      %v1211 = vtanh.pop %v1174
      %v1212 = vtanh.pop %v1177
      %v1213 = vtanh.pop %v1180
      %v1214 = vtanh.pop %v1183
      %v1215 = vtanh.pop %v1186
      %v1216 = vtanh.pop %v1189
      %v1217 = vtanh.pop %v1192
      %v1218 = vtanh.pop %v1195
      %v1219 = vtanh.pop %v1198
      %v1220 = vtanh.pop %v1201
      %v1221 = vtanh.pop %v1204
      %v1222 = vld [vmem:[%s5] sm:$0xff]
      %v1223 = vld [vmem:[%s5 + $0x8] sm:$0xff]
      %v1224 = vld [vmem:[%s5 + $0x10] sm:$0xff]
      %v1225 = vld [vmem:[%s5 + $0x18] sm:$0xff]
      %v1226 = vperm.slane %v942, 2
      %v1228 = vsel %vm1092, %v1206, 0
      %v1231 = vsel %vm1092, %v1207, 0
      %v1234 = vsel %vm1092, %v1208, 0
      %v1237 = vsel %vm1092, %v1209, 0
      %v1240 = vsel %vm1092, %v1210, 0
      %v1243 = vsel %vm1092, %v1211, 0
      %v1246 = vsel %vm1092, %v1212, 0
      %v1249 = vsel %vm1092, %v1213, 0
      %v1252 = vsel %vm1092, %v1214, 0
      %v1255 = vsel %vm1092, %v1215, 0
      %v1258 = vsel %vm1092, %v1216, 0
      %v1261 = vsel %vm1092, %v1217, 0
      %v1264 = vsel %vm1092, %v1218, 0
      %v1267 = vsel %vm1092, %v1219, 0
      %v1270 = vsel %vm1092, %v1220, 0
      %v1273 = vsel %vm1092, %v1221, 0
      %1275 = vmatpush.msra.mxu0 0.0
      %1276 = vmatpush.msra.mxu0 0.0
      %1277 = vmatpush.msra.mxu0 0.0
      %1278 = vmatpush.msra.mxu0 0.0
      %1279 = vmatpush.msra.mxu0 0.0
      %1280 = vmatpush.msra.mxu0 0.0
      %1281 = vmatpush.msra.mxu0 0.0
      %1282 = vmatpush.msra.mxu0 0.0
      %1283 = vmatpush.msra.mxu0 0.0
      %1284 = vmatpush.msra.mxu0 0.0
      %1285 = vmatpush.msra.mxu0 0.0
      %1286 = vmatpush.msra.mxu0 0.0
      %1287 = vmatpush.msra.mxu0 %v1225
      %1288 = vmatpush.msra.mxu0 %v1224
      %1289 = vmatpush.msra.mxu0 %v1223
      %1290 = vmatpush.msra.mxu0 %v1222
      %1291 = vmatmul.f32.gmra.mxu0 %v1228
      %v1292 = vpop.f32.mrf.mxu0
      %v1293 = vadd.f32 %v1226, %v1292
      %1294 = vmatmul.f32.gmra.mxu0 %v1231
      %v1295 = vpop.f32.mrf.mxu0
      %v1296 = vadd.f32 %v1226, %v1295
      %1297 = vmatmul.f32.gmra.mxu0 %v1234
      %v1298 = vpop.f32.mrf.mxu0
      %v1299 = vadd.f32 %v1226, %v1298
      %1300 = vmatmul.f32.gmra.mxu0 %v1237
      %v1301 = vpop.f32.mrf.mxu0
      %v1302 = vadd.f32 %v1226, %v1301
      %1303 = vmatmul.f32.gmra.mxu0 %v1240
      %v1304 = vpop.f32.mrf.mxu0
      %v1305 = vadd.f32 %v1226, %v1304
      %1306 = vmatmul.f32.gmra.mxu0 %v1243
      %v1307 = vpop.f32.mrf.mxu0
      %v1308 = vadd.f32 %v1226, %v1307
      %1309 = vmatmul.f32.gmra.mxu0 %v1246
      %v1310 = vpop.f32.mrf.mxu0
      %v1311 = vadd.f32 %v1226, %v1310
      %1312 = vmatmul.f32.gmra.mxu0 %v1249
      %v1313 = vpop.f32.mrf.mxu0
      %v1314 = vadd.f32 %v1226, %v1313
      %1315 = vmatmul.f32.gmra.mxu0 %v1252
      %v1316 = vpop.f32.mrf.mxu0
      %v1317 = vadd.f32 %v1226, %v1316
      %1318 = vmatmul.f32.gmra.mxu0 %v1255
      %v1319 = vpop.f32.mrf.mxu0
      %v1320 = vadd.f32 %v1226, %v1319
      %1321 = vmatmul.f32.gmra.mxu0 %v1258
      %v1322 = vpop.f32.mrf.mxu0
      %v1323 = vadd.f32 %v1226, %v1322
      %1324 = vmatmul.f32.gmra.mxu0 %v1261
      %v1325 = vpop.f32.mrf.mxu0
      %v1326 = vadd.f32 %v1226, %v1325
      %1327 = vmatmul.f32.gmra.mxu0 %v1264
      %v1328 = vpop.f32.mrf.mxu0
      %v1329 = vadd.f32 %v1226, %v1328
      %1330 = vmatmul.f32.gmra.mxu0 %v1267
      %v1331 = vpop.f32.mrf.mxu0
      %v1332 = vadd.f32 %v1226, %v1331
      %1333 = vmatmul.f32.gmra.mxu0 %v1270
      %v1334 = vpop.f32.mrf.mxu0
      %v1335 = vadd.f32 %v1226, %v1334
      %1336 = vmatmul.f32.gmra.mxu0 %v1273
      %v1337 = vpop.f32.mrf.mxu0
      %v1338 = vadd.f32 %v1226, %v1337
      %1339 = vdwg.mxu0
      %v1340 = vtanh.pop %v1293
      %v1341 = vtanh.pop %v1296
      %v1342 = vtanh.pop %v1299
      %v1343 = vtanh.pop %v1302
      %v1344 = vtanh.pop %v1305
      %v1345 = vtanh.pop %v1308
      %v1346 = vtanh.pop %v1311
      %v1347 = vtanh.pop %v1314
      %v1348 = vtanh.pop %v1317
      %v1349 = vtanh.pop %v1320
      %v1350 = vtanh.pop %v1323
      %v1351 = vtanh.pop %v1326
      %v1352 = vtanh.pop %v1329
      %v1353 = vtanh.pop %v1332
      %v1354 = vtanh.pop %v1335
      %v1355 = vtanh.pop %v1338
      %v1356 = vadd.f32 %v1206, %v1340
      %v1357 = vadd.f32 %v1207, %v1341
      %v1358 = vadd.f32 %v1208, %v1342
      %v1359 = vadd.f32 %v1209, %v1343
      %v1360 = vadd.f32 %v1210, %v1344
      %v1361 = vadd.f32 %v1211, %v1345
      %v1362 = vadd.f32 %v1212, %v1346
      %v1363 = vadd.f32 %v1213, %v1347
      %v1364 = vadd.f32 %v1214, %v1348
      %v1365 = vadd.f32 %v1215, %v1349
      %v1366 = vadd.f32 %v1216, %v1350
      %v1367 = vadd.f32 %v1217, %v1351
      %v1368 = vadd.f32 %v1218, %v1352
      %v1369 = vadd.f32 %v1219, %v1353
      %v1370 = vadd.f32 %v1220, %v1354
      %v1371 = vadd.f32 %v1221, %v1355
      %v1372 = vperm.slane %v942, 3
      %v1374 = vsel %vm1092, %v1356, 0
      %v1377 = vsel %vm1092, %v1357, 0
      %v1380 = vsel %vm1092, %v1358, 0
      %v1383 = vsel %vm1092, %v1359, 0
      %v1386 = vsel %vm1092, %v1360, 0
      %v1389 = vsel %vm1092, %v1361, 0
      %v1392 = vsel %vm1092, %v1362, 0
      %v1395 = vsel %vm1092, %v1363, 0
      %v1398 = vsel %vm1092, %v1364, 0
      %v1401 = vsel %vm1092, %v1365, 0
      %v1404 = vsel %vm1092, %v1366, 0
      %v1407 = vsel %vm1092, %v1367, 0
      %v1410 = vsel %vm1092, %v1368, 0
      %v1413 = vsel %vm1092, %v1369, 0
      %v1416 = vsel %vm1092, %v1370, 0
      %v1419 = vsel %vm1092, %v1371, 0
      %1421 = vmatpush.msra.mxu0 0.0
      %1422 = vmatpush.msra.mxu0 0.0
      %1423 = vmatpush.msra.mxu0 0.0
      %1424 = vmatpush.msra.mxu0 0.0
      %1425 = vmatpush.msra.mxu0 0.0
      %1426 = vmatpush.msra.mxu0 0.0
      %1427 = vmatpush.msra.mxu0 0.0
      %1428 = vmatpush.msra.mxu0 0.0
      %1429 = vmatpush.msra.mxu0 0.0
      %1430 = vmatpush.msra.mxu0 0.0
      %1431 = vmatpush.msra.mxu0 0.0
      %1432 = vmatpush.msra.mxu0 0.0
      %1433 = vmatpush.msra.mxu0 %v950
      %1434 = vmatpush.msra.mxu0 %v949
      %1435 = vmatpush.msra.mxu0 %v948
      %1436 = vmatpush.msra.mxu0 %v947
      %1437 = vmatmul.f32.gmra.mxu0 %v1374
      %v1438 = vpop.f32.mrf.mxu0
      %v1439 = vadd.f32 %v1372, %v1438
      %1440 = vmatmul.f32.gmra.mxu0 %v1377
      %v1441 = vpop.f32.mrf.mxu0
      %v1442 = vadd.f32 %v1372, %v1441
      %1443 = vmatmul.f32.gmra.mxu0 %v1380
      %v1444 = vpop.f32.mrf.mxu0
      %v1445 = vadd.f32 %v1372, %v1444
      %1446 = vmatmul.f32.gmra.mxu0 %v1383
      %v1447 = vpop.f32.mrf.mxu0
      %v1448 = vadd.f32 %v1372, %v1447
      %1449 = vmatmul.f32.gmra.mxu0 %v1386
      %v1450 = vpop.f32.mrf.mxu0
      %v1451 = vadd.f32 %v1372, %v1450
      %1452 = vmatmul.f32.gmra.mxu0 %v1389
      %v1453 = vpop.f32.mrf.mxu0
      %v1454 = vadd.f32 %v1372, %v1453
      %1455 = vmatmul.f32.gmra.mxu0 %v1392
      %v1456 = vpop.f32.mrf.mxu0
      %v1457 = vadd.f32 %v1372, %v1456
      %1458 = vmatmul.f32.gmra.mxu0 %v1395
      %v1459 = vpop.f32.mrf.mxu0
      %v1460 = vadd.f32 %v1372, %v1459
      %1461 = vmatmul.f32.gmra.mxu0 %v1398
      %v1462 = vpop.f32.mrf.mxu0
      %v1463 = vadd.f32 %v1372, %v1462
      %1464 = vmatmul.f32.gmra.mxu0 %v1401
      %v1465 = vpop.f32.mrf.mxu0
      %v1466 = vadd.f32 %v1372, %v1465
      %1467 = vmatmul.f32.gmra.mxu0 %v1404
      %v1468 = vpop.f32.mrf.mxu0
      %v1469 = vadd.f32 %v1372, %v1468
      %1470 = vmatmul.f32.gmra.mxu0 %v1407
      %v1471 = vpop.f32.mrf.mxu0
      %v1472 = vadd.f32 %v1372, %v1471
      %1473 = vmatmul.f32.gmra.mxu0 %v1410
      %v1474 = vpop.f32.mrf.mxu0
      %v1475 = vadd.f32 %v1372, %v1474
      %1476 = vmatmul.f32.gmra.mxu0 %v1413
      %v1477 = vpop.f32.mrf.mxu0
      %v1478 = vadd.f32 %v1372, %v1477
      %1479 = vmatmul.f32.gmra.mxu0 %v1416
      %v1480 = vpop.f32.mrf.mxu0
      %v1481 = vadd.f32 %v1372, %v1480
      %1482 = vmatmul.f32.gmra.mxu0 %v1419
      %v1483 = vpop.f32.mrf.mxu0
      %v1484 = vadd.f32 %v1372, %v1483
      %1485 = vdwg.mxu0
      %v1486 = vtanh.pop %v1439
      %v1487 = vtanh.pop %v1442
      %v1488 = vtanh.pop %v1445
      %v1489 = vtanh.pop %v1448
      %v1490 = vtanh.pop %v1451
      %v1491 = vtanh.pop %v1454
      %v1492 = vtanh.pop %v1457
      %v1493 = vtanh.pop %v1460
      %v1494 = vtanh.pop %v1463
      %v1495 = vtanh.pop %v1466
      %v1496 = vtanh.pop %v1469
      %v1497 = vtanh.pop %v1472
      %v1498 = vtanh.pop %v1475
      %v1499 = vtanh.pop %v1478
      %v1500 = vtanh.pop %v1481
      %v1501 = vtanh.pop %v1484
      %v1502 = vperm.slane %v942, 4
      %v1504 = vsel %vm1092, %v1486, 0
      %v1507 = vsel %vm1092, %v1487, 0
      %v1510 = vsel %vm1092, %v1488, 0
      %v1513 = vsel %vm1092, %v1489, 0
      %v1516 = vsel %vm1092, %v1490, 0
      %v1519 = vsel %vm1092, %v1491, 0
      %v1522 = vsel %vm1092, %v1492, 0
      %v1525 = vsel %vm1092, %v1493, 0
      %v1528 = vsel %vm1092, %v1494, 0
      %v1531 = vsel %vm1092, %v1495, 0
      %v1534 = vsel %vm1092, %v1496, 0
      %v1537 = vsel %vm1092, %v1497, 0
      %v1540 = vsel %vm1092, %v1498, 0
      %v1543 = vsel %vm1092, %v1499, 0
      %v1546 = vsel %vm1092, %v1500, 0
      %v1549 = vsel %vm1092, %v1501, 0
      %1551 = vmatpush.msra.mxu0 0.0
      %1552 = vmatpush.msra.mxu0 0.0
      %1553 = vmatpush.msra.mxu0 0.0
      %1554 = vmatpush.msra.mxu0 0.0
      %1555 = vmatpush.msra.mxu0 0.0
      %1556 = vmatpush.msra.mxu0 0.0
      %1557 = vmatpush.msra.mxu0 0.0
      %1558 = vmatpush.msra.mxu0 0.0
      %1559 = vmatpush.msra.mxu0 0.0
      %1560 = vmatpush.msra.mxu0 0.0
      %1561 = vmatpush.msra.mxu0 0.0
      %1562 = vmatpush.msra.mxu0 0.0
      %1563 = vmatpush.msra.mxu0 %v954
      %1564 = vmatpush.msra.mxu0 %v953
      %1565 = vmatpush.msra.mxu0 %v952
      %1566 = vmatpush.msra.mxu0 %v951
      %1567 = vmatmul.f32.gmra.mxu0 %v1504
      %v1568 = vpop.f32.mrf.mxu0
      %v1569 = vadd.f32 %v1502, %v1568
      %1570 = vmatmul.f32.gmra.mxu0 %v1507
      %v1571 = vpop.f32.mrf.mxu0
      %v1572 = vadd.f32 %v1502, %v1571
      %1573 = vmatmul.f32.gmra.mxu0 %v1510
      %v1574 = vpop.f32.mrf.mxu0
      %v1575 = vadd.f32 %v1502, %v1574
      %1576 = vmatmul.f32.gmra.mxu0 %v1513
      %v1577 = vpop.f32.mrf.mxu0
      %v1578 = vadd.f32 %v1502, %v1577
      %1579 = vmatmul.f32.gmra.mxu0 %v1516
      %v1580 = vpop.f32.mrf.mxu0
      %v1581 = vadd.f32 %v1502, %v1580
      %1582 = vmatmul.f32.gmra.mxu0 %v1519
      %v1583 = vpop.f32.mrf.mxu0
      %v1584 = vadd.f32 %v1502, %v1583
      %1585 = vmatmul.f32.gmra.mxu0 %v1522
      %v1586 = vpop.f32.mrf.mxu0
      %v1587 = vadd.f32 %v1502, %v1586
      %1588 = vmatmul.f32.gmra.mxu0 %v1525
      %v1589 = vpop.f32.mrf.mxu0
      %v1590 = vadd.f32 %v1502, %v1589
      %1591 = vmatmul.f32.gmra.mxu0 %v1528
      %v1592 = vpop.f32.mrf.mxu0
      %v1593 = vadd.f32 %v1502, %v1592
      %1594 = vmatmul.f32.gmra.mxu0 %v1531
      %v1595 = vpop.f32.mrf.mxu0
      %v1596 = vadd.f32 %v1502, %v1595
      %1597 = vmatmul.f32.gmra.mxu0 %v1534
      %v1598 = vpop.f32.mrf.mxu0
      %v1599 = vadd.f32 %v1502, %v1598
      %1600 = vmatmul.f32.gmra.mxu0 %v1537
      %v1601 = vpop.f32.mrf.mxu0
      %v1602 = vadd.f32 %v1502, %v1601
      %1603 = vmatmul.f32.gmra.mxu0 %v1540
      %v1604 = vpop.f32.mrf.mxu0
      %v1605 = vadd.f32 %v1502, %v1604
      %1606 = vmatmul.f32.gmra.mxu0 %v1543
      %v1607 = vpop.f32.mrf.mxu0
      %v1608 = vadd.f32 %v1502, %v1607
      %1609 = vmatmul.f32.gmra.mxu0 %v1546
      %v1610 = vpop.f32.mrf.mxu0
      %v1611 = vadd.f32 %v1502, %v1610
      %1612 = vmatmul.f32.gmra.mxu0 %v1549
      %v1613 = vpop.f32.mrf.mxu0
      %v1614 = vadd.f32 %v1502, %v1613
      %1615 = vdwg.mxu0
      %v1616 = vtanh.pop %v1569
      %v1617 = vtanh.pop %v1572
      %v1618 = vtanh.pop %v1575
      %v1619 = vtanh.pop %v1578
      %v1620 = vtanh.pop %v1581
      %v1621 = vtanh.pop %v1584
      %v1622 = vtanh.pop %v1587
      %v1623 = vtanh.pop %v1590
      %v1624 = vtanh.pop %v1593
      %v1625 = vtanh.pop %v1596
      %v1626 = vtanh.pop %v1599
      %v1627 = vtanh.pop %v1602
      %v1628 = vtanh.pop %v1605
      %v1629 = vtanh.pop %v1608
      %v1630 = vtanh.pop %v1611
      %v1631 = vtanh.pop %v1614
      %1648 = vrot.lane.b32.xlu0 %v1340, 96
      %v1649 = vpop.permute.xlu0 %1648
      %1650 = vrot.lane.b32.xlu0 %v1341, 96
      %v1651 = vpop.permute.xlu0 %1650
      %1652 = vrot.lane.b32.xlu0 %v1342, 96
      %v1653 = vpop.permute.xlu0 %1652
      %1654 = vrot.lane.b32.xlu0 %v1343, 96
      %v1655 = vpop.permute.xlu0 %1654
      %1656 = vrot.lane.b32.xlu0 %v1344, 96
      %v1657 = vpop.permute.xlu0 %1656
      %1658 = vrot.lane.b32.xlu0 %v1345, 96
      %v1659 = vpop.permute.xlu0 %1658
      %1660 = vrot.lane.b32.xlu0 %v1346, 96
      %v1661 = vpop.permute.xlu0 %1660
      %1662 = vrot.lane.b32.xlu0 %v1347, 96
      %v1663 = vpop.permute.xlu0 %1662
      %1664 = vrot.lane.b32.xlu0 %v1348, 96
      %v1665 = vpop.permute.xlu0 %1664
      %1666 = vrot.lane.b32.xlu0 %v1349, 96
      %v1667 = vpop.permute.xlu0 %1666
      %1668 = vrot.lane.b32.xlu0 %v1350, 96
      %v1669 = vpop.permute.xlu0 %1668
      %1670 = vrot.lane.b32.xlu0 %v1351, 96
      %v1671 = vpop.permute.xlu0 %1670
      %1672 = vrot.lane.b32.xlu0 %v1352, 96
      %v1673 = vpop.permute.xlu0 %1672
      %1674 = vrot.lane.b32.xlu0 %v1353, 96
      %v1675 = vpop.permute.xlu0 %1674
      %1676 = vrot.lane.b32.xlu0 %v1354, 96
      %v1677 = vpop.permute.xlu0 %1676
      %1678 = vrot.lane.b32.xlu0 %v1355, 96
      %v1679 = vpop.permute.xlu0 %1678
      %v1696 = vadd.f32 %v1486, %v1649
      %v1697 = vadd.f32 %v1487, %v1651
      %v1698 = vadd.f32 %v1488, %v1653
      %v1699 = vadd.f32 %v1489, %v1655
      %v1700 = vadd.f32 %v1490, %v1657
      %v1701 = vadd.f32 %v1491, %v1659
      %v1702 = vadd.f32 %v1492, %v1661
      %v1703 = vadd.f32 %v1493, %v1663
      %v1704 = vadd.f32 %v1494, %v1665
      %v1705 = vadd.f32 %v1495, %v1667
      %v1706 = vadd.f32 %v1496, %v1669
      %v1707 = vadd.f32 %v1497, %v1671
      %v1708 = vadd.f32 %v1498, %v1673
      %v1709 = vadd.f32 %v1499, %v1675
      %v1710 = vadd.f32 %v1500, %v1677
      %v1711 = vadd.f32 %v1501, %v1679
      %v1712 = vperm.slane %v942, 5
      %v1714 = vsel %vm1092, %v1696, 0
      %v1717 = vsel %vm1092, %v1697, 0
      %v1720 = vsel %vm1092, %v1698, 0
      %v1723 = vsel %vm1092, %v1699, 0
      %v1726 = vsel %vm1092, %v1700, 0
      %v1729 = vsel %vm1092, %v1701, 0
      %v1732 = vsel %vm1092, %v1702, 0
      %v1735 = vsel %vm1092, %v1703, 0
      %v1738 = vsel %vm1092, %v1704, 0
      %v1741 = vsel %vm1092, %v1705, 0
      %v1744 = vsel %vm1092, %v1706, 0
      %v1747 = vsel %vm1092, %v1707, 0
      %v1750 = vsel %vm1092, %v1708, 0
      %v1753 = vsel %vm1092, %v1709, 0
      %v1756 = vsel %vm1092, %v1710, 0
      %v1759 = vsel %vm1092, %v1711, 0
      %1761 = vmatpush.msra.mxu0 0.0
      %1762 = vmatpush.msra.mxu0 0.0
      %1763 = vmatpush.msra.mxu0 0.0
      %1764 = vmatpush.msra.mxu0 0.0
      %1765 = vmatpush.msra.mxu0 0.0
      %1766 = vmatpush.msra.mxu0 0.0
      %1767 = vmatpush.msra.mxu0 0.0
      %1768 = vmatpush.msra.mxu0 0.0
      %1769 = vmatpush.msra.mxu0 0.0
      %1770 = vmatpush.msra.mxu0 0.0
      %1771 = vmatpush.msra.mxu0 0.0
      %1772 = vmatpush.msra.mxu0 0.0
      %1773 = vmatpush.msra.mxu0 %v958
      %1774 = vmatpush.msra.mxu0 %v957
      %1775 = vmatpush.msra.mxu0 %v956
      %1776 = vmatpush.msra.mxu0 %v955
      %1777 = vmatmul.f32.gmra.mxu0 %v1714
      %v1778 = vpop.f32.mrf.mxu0
      %v1779 = vadd.f32 %v1712, %v1778
      %1780 = vmatmul.f32.gmra.mxu0 %v1717
      %v1781 = vpop.f32.mrf.mxu0
      %v1782 = vadd.f32 %v1712, %v1781
      %1783 = vmatmul.f32.gmra.mxu0 %v1720
      %v1784 = vpop.f32.mrf.mxu0
      %v1785 = vadd.f32 %v1712, %v1784
      %1786 = vmatmul.f32.gmra.mxu0 %v1723
      %v1787 = vpop.f32.mrf.mxu0
      %v1788 = vadd.f32 %v1712, %v1787
      %1789 = vmatmul.f32.gmra.mxu0 %v1726
      %v1790 = vpop.f32.mrf.mxu0
      %v1791 = vadd.f32 %v1712, %v1790
      %1792 = vmatmul.f32.gmra.mxu0 %v1729
      %v1793 = vpop.f32.mrf.mxu0
      %v1794 = vadd.f32 %v1712, %v1793
      %1795 = vmatmul.f32.gmra.mxu0 %v1732
      %v1796 = vpop.f32.mrf.mxu0
      %v1797 = vadd.f32 %v1712, %v1796
      %1798 = vmatmul.f32.gmra.mxu0 %v1735
      %v1799 = vpop.f32.mrf.mxu0
      %v1800 = vadd.f32 %v1712, %v1799
      %1801 = vmatmul.f32.gmra.mxu0 %v1738
      %v1802 = vpop.f32.mrf.mxu0
      %v1803 = vadd.f32 %v1712, %v1802
      %1804 = vmatmul.f32.gmra.mxu0 %v1741
      %v1805 = vpop.f32.mrf.mxu0
      %v1806 = vadd.f32 %v1712, %v1805
      %1807 = vmatmul.f32.gmra.mxu0 %v1744
      %v1808 = vpop.f32.mrf.mxu0
      %v1809 = vadd.f32 %v1712, %v1808
      %1810 = vmatmul.f32.gmra.mxu0 %v1747
      %v1811 = vpop.f32.mrf.mxu0
      %v1812 = vadd.f32 %v1712, %v1811
      %1813 = vmatmul.f32.gmra.mxu0 %v1750
      %v1814 = vpop.f32.mrf.mxu0
      %v1815 = vadd.f32 %v1712, %v1814
      %1816 = vmatmul.f32.gmra.mxu0 %v1753
      %v1817 = vpop.f32.mrf.mxu0
      %v1818 = vadd.f32 %v1712, %v1817
      %1819 = vmatmul.f32.gmra.mxu0 %v1756
      %v1820 = vpop.f32.mrf.mxu0
      %v1821 = vadd.f32 %v1712, %v1820
      %1822 = vmatmul.f32.gmra.mxu0 %v1759
      %v1823 = vpop.f32.mrf.mxu0
      %v1824 = vadd.f32 %v1712, %v1823
      %1825 = vdwg.mxu0
      %v1826 = vtanh.pop %v1779
      %v1827 = vtanh.pop %v1782
      %v1828 = vtanh.pop %v1785
      %v1829 = vtanh.pop %v1788
      %v1830 = vtanh.pop %v1791
      %v1831 = vtanh.pop %v1794
      %v1832 = vtanh.pop %v1797
      %v1833 = vtanh.pop %v1800
      %v1834 = vtanh.pop %v1803
      %v1835 = vtanh.pop %v1806
      %v1836 = vtanh.pop %v1809
      %v1837 = vtanh.pop %v1812
      %v1838 = vtanh.pop %v1815
      %v1839 = vtanh.pop %v1818
      %v1840 = vtanh.pop %v1821
      %v1841 = vtanh.pop %v1824
      %1858 = vrot.lane.b32.xlu0 %v1616, 64
      %v1859 = vpop.permute.xlu0 %1858
      %1860 = vrot.lane.b32.xlu0 %v1617, 64
      %v1861 = vpop.permute.xlu0 %1860
      %1862 = vrot.lane.b32.xlu0 %v1618, 64
      %v1863 = vpop.permute.xlu0 %1862
      %1864 = vrot.lane.b32.xlu0 %v1619, 64
      %v1865 = vpop.permute.xlu0 %1864
      %1866 = vrot.lane.b32.xlu0 %v1620, 64
      %v1867 = vpop.permute.xlu0 %1866
      %1868 = vrot.lane.b32.xlu0 %v1621, 64
      %v1869 = vpop.permute.xlu0 %1868
      %1870 = vrot.lane.b32.xlu0 %v1622, 64
      %v1871 = vpop.permute.xlu0 %1870
      %1872 = vrot.lane.b32.xlu0 %v1623, 64
      %v1873 = vpop.permute.xlu0 %1872
      %1874 = vrot.lane.b32.xlu0 %v1624, 64
      %v1875 = vpop.permute.xlu0 %1874
      %1876 = vrot.lane.b32.xlu0 %v1625, 64
      %v1877 = vpop.permute.xlu0 %1876
      %1878 = vrot.lane.b32.xlu0 %v1626, 64
      %v1879 = vpop.permute.xlu0 %1878
      %1880 = vrot.lane.b32.xlu0 %v1627, 64
      %v1881 = vpop.permute.xlu0 %1880
      %1882 = vrot.lane.b32.xlu0 %v1628, 64
      %v1883 = vpop.permute.xlu0 %1882
      %1884 = vrot.lane.b32.xlu0 %v1629, 64
      %v1885 = vpop.permute.xlu0 %1884
      %1886 = vrot.lane.b32.xlu0 %v1630, 64
      %v1887 = vpop.permute.xlu0 %1886
      %1888 = vrot.lane.b32.xlu0 %v1631, 64
      %v1889 = vpop.permute.xlu0 %1888
      %v1906 = vadd.f32 %v1340, %v1859
      %v1907 = vadd.f32 %v1341, %v1861
      %v1908 = vadd.f32 %v1342, %v1863
      %v1909 = vadd.f32 %v1343, %v1865
      %v1910 = vadd.f32 %v1344, %v1867
      %v1911 = vadd.f32 %v1345, %v1869
      %v1912 = vadd.f32 %v1346, %v1871
      %v1913 = vadd.f32 %v1347, %v1873
      %v1914 = vadd.f32 %v1348, %v1875
      %v1915 = vadd.f32 %v1349, %v1877
      %v1916 = vadd.f32 %v1350, %v1879
      %v1917 = vadd.f32 %v1351, %v1881
      %v1918 = vadd.f32 %v1352, %v1883
      %v1919 = vadd.f32 %v1353, %v1885
      %v1920 = vadd.f32 %v1354, %v1887
      %v1921 = vadd.f32 %v1355, %v1889
      %1938 = vrot.lane.b32.xlu0 %v1826, 64
      %v1939 = vpop.permute.xlu0 %1938
      %1940 = vrot.lane.b32.xlu0 %v1827, 64
      %v1941 = vpop.permute.xlu0 %1940
      %1942 = vrot.lane.b32.xlu0 %v1828, 64
      %v1943 = vpop.permute.xlu0 %1942
      %1944 = vrot.lane.b32.xlu0 %v1829, 64
      %v1945 = vpop.permute.xlu0 %1944
      %1946 = vrot.lane.b32.xlu0 %v1830, 64
      %v1947 = vpop.permute.xlu0 %1946
      %1948 = vrot.lane.b32.xlu0 %v1831, 64
      %v1949 = vpop.permute.xlu0 %1948
      %1950 = vrot.lane.b32.xlu0 %v1832, 64
      %v1951 = vpop.permute.xlu0 %1950
      %1952 = vrot.lane.b32.xlu0 %v1833, 64
      %v1953 = vpop.permute.xlu0 %1952
      %1954 = vrot.lane.b32.xlu0 %v1834, 64
      %v1955 = vpop.permute.xlu0 %1954
      %1956 = vrot.lane.b32.xlu0 %v1835, 64
      %v1957 = vpop.permute.xlu0 %1956
      %1958 = vrot.lane.b32.xlu0 %v1836, 64
      %v1959 = vpop.permute.xlu0 %1958
      %1960 = vrot.lane.b32.xlu0 %v1837, 64
      %v1961 = vpop.permute.xlu0 %1960
      %1962 = vrot.lane.b32.xlu0 %v1838, 64
      %v1963 = vpop.permute.xlu0 %1962
      %1964 = vrot.lane.b32.xlu0 %v1839, 64
      %v1965 = vpop.permute.xlu0 %1964
      %1966 = vrot.lane.b32.xlu0 %v1840, 64
      %v1967 = vpop.permute.xlu0 %1966
      %1968 = vrot.lane.b32.xlu0 %v1841, 64
      %v1969 = vpop.permute.xlu0 %1968
      %v1986 = vadd.f32 %v1906, %v1939
      %v1987 = vadd.f32 %v1907, %v1941
      %v1988 = vadd.f32 %v1908, %v1943
      %v1989 = vadd.f32 %v1909, %v1945
      %v1990 = vadd.f32 %v1910, %v1947
      %v1991 = vadd.f32 %v1911, %v1949
      %v1992 = vadd.f32 %v1912, %v1951
      %v1993 = vadd.f32 %v1913, %v1953
      %v1994 = vadd.f32 %v1914, %v1955
      %v1995 = vadd.f32 %v1915, %v1957
      %v1996 = vadd.f32 %v1916, %v1959
      %v1997 = vadd.f32 %v1917, %v1961
      %v1998 = vadd.f32 %v1918, %v1963
      %v1999 = vadd.f32 %v1919, %v1965
      %v2000 = vadd.f32 %v1920, %v1967
      %v2001 = vadd.f32 %v1921, %v1969
      %v2002 = vld [vmem:[%s6] sm:$0xff]
      %v2003 = vld [vmem:[%s6 + $0x8] sm:$0xff]
      %v2004 = vld [vmem:[%s6 + $0x10] sm:$0xff]
      %v2005 = vld [vmem:[%s6 + $0x18] sm:$0xff]
      %v2006 = vperm.slane %v942, 6
      %2023 = vrot.lane.b32.xlu0 %v1986, 64
      %v2024 = vpop.permute.xlu0 %2023
      %2025 = vrot.lane.b32.xlu0 %v1987, 64
      %v2026 = vpop.permute.xlu0 %2025
      %2027 = vrot.lane.b32.xlu0 %v1988, 64
      %v2028 = vpop.permute.xlu0 %2027
      %2029 = vrot.lane.b32.xlu0 %v1989, 64
      %v2030 = vpop.permute.xlu0 %2029
      %2031 = vrot.lane.b32.xlu0 %v1990, 64
      %v2032 = vpop.permute.xlu0 %2031
      %2033 = vrot.lane.b32.xlu0 %v1991, 64
      %v2034 = vpop.permute.xlu0 %2033
      %2035 = vrot.lane.b32.xlu0 %v1992, 64
      %v2036 = vpop.permute.xlu0 %2035
      %2037 = vrot.lane.b32.xlu0 %v1993, 64
      %v2038 = vpop.permute.xlu0 %2037
      %2039 = vrot.lane.b32.xlu0 %v1994, 64
      %v2040 = vpop.permute.xlu0 %2039
      %2041 = vrot.lane.b32.xlu0 %v1995, 64
      %v2042 = vpop.permute.xlu0 %2041
      %2043 = vrot.lane.b32.xlu0 %v1996, 64
      %v2044 = vpop.permute.xlu0 %2043
      %2045 = vrot.lane.b32.xlu0 %v1997, 64
      %v2046 = vpop.permute.xlu0 %2045
      %2047 = vrot.lane.b32.xlu0 %v1998, 64
      %v2048 = vpop.permute.xlu0 %2047
      %2049 = vrot.lane.b32.xlu0 %v1999, 64
      %v2050 = vpop.permute.xlu0 %2049
      %2051 = vrot.lane.b32.xlu0 %v2000, 64
      %v2052 = vpop.permute.xlu0 %2051
      %2053 = vrot.lane.b32.xlu0 %v2001, 64
      %v2054 = vpop.permute.xlu0 %2053
      %v2055 = vsel %vm1092, %v2024, 0
      %v2057 = vsel %vm1092, %v2026, 0
      %v2059 = vsel %vm1092, %v2028, 0
      %v2061 = vsel %vm1092, %v2030, 0
      %v2063 = vsel %vm1092, %v2032, 0
      %v2065 = vsel %vm1092, %v2034, 0
      %v2067 = vsel %vm1092, %v2036, 0
      %v2069 = vsel %vm1092, %v2038, 0
      %v2071 = vsel %vm1092, %v2040, 0
      %v2073 = vsel %vm1092, %v2042, 0
      %v2075 = vsel %vm1092, %v2044, 0
      %v2077 = vsel %vm1092, %v2046, 0
      %v2079 = vsel %vm1092, %v2048, 0
      %v2081 = vsel %vm1092, %v2050, 0
      %v2083 = vsel %vm1092, %v2052, 0
      %v2085 = vsel %vm1092, %v2054, 0
      %2087 = vmatpush.msra.mxu0 0.0
      %2088 = vmatpush.msra.mxu0 0.0
      %2089 = vmatpush.msra.mxu0 0.0
      %2090 = vmatpush.msra.mxu0 0.0
      %2091 = vmatpush.msra.mxu0 0.0
      %2092 = vmatpush.msra.mxu0 0.0
      %2093 = vmatpush.msra.mxu0 0.0
      %2094 = vmatpush.msra.mxu0 0.0
      %2095 = vmatpush.msra.mxu0 0.0
      %2096 = vmatpush.msra.mxu0 0.0
      %2097 = vmatpush.msra.mxu0 0.0
      %2098 = vmatpush.msra.mxu0 0.0
      %2099 = vmatpush.msra.mxu0 %v2005
      %2100 = vmatpush.msra.mxu0 %v2004
      %2101 = vmatpush.msra.mxu0 %v2003
      %2102 = vmatpush.msra.mxu0 %v2002
      %2103 = vmatmul.f32.gmra.mxu0 %v2055
      %v2104 = vpop.f32.mrf.mxu0
      %v2105 = vadd.f32 %v2006, %v2104
      %2106 = vmatmul.f32.gmra.mxu0 %v2057
      %v2107 = vpop.f32.mrf.mxu0
      %v2108 = vadd.f32 %v2006, %v2107
      %2109 = vmatmul.f32.gmra.mxu0 %v2059
      %v2110 = vpop.f32.mrf.mxu0
      %v2111 = vadd.f32 %v2006, %v2110
      %2112 = vmatmul.f32.gmra.mxu0 %v2061
      %v2113 = vpop.f32.mrf.mxu0
      %v2114 = vadd.f32 %v2006, %v2113
      %2115 = vmatmul.f32.gmra.mxu0 %v2063
      %v2116 = vpop.f32.mrf.mxu0
      %v2117 = vadd.f32 %v2006, %v2116
      %2118 = vmatmul.f32.gmra.mxu0 %v2065
      %v2119 = vpop.f32.mrf.mxu0
      %v2120 = vadd.f32 %v2006, %v2119
      %2121 = vmatmul.f32.gmra.mxu0 %v2067
      %v2122 = vpop.f32.mrf.mxu0
      %v2123 = vadd.f32 %v2006, %v2122
      %2124 = vmatmul.f32.gmra.mxu0 %v2069
      %v2125 = vpop.f32.mrf.mxu0
      %v2126 = vadd.f32 %v2006, %v2125
      %2127 = vmatmul.f32.gmra.mxu0 %v2071
      %v2128 = vpop.f32.mrf.mxu0
      %v2129 = vadd.f32 %v2006, %v2128
      %2130 = vmatmul.f32.gmra.mxu0 %v2073
      %v2131 = vpop.f32.mrf.mxu0
      %v2132 = vadd.f32 %v2006, %v2131
      %2133 = vmatmul.f32.gmra.mxu0 %v2075
      %v2134 = vpop.f32.mrf.mxu0
      %v2135 = vadd.f32 %v2006, %v2134
      %2136 = vmatmul.f32.gmra.mxu0 %v2077
      %v2137 = vpop.f32.mrf.mxu0
      %v2138 = vadd.f32 %v2006, %v2137
      %2139 = vmatmul.f32.gmra.mxu0 %v2079
      %v2140 = vpop.f32.mrf.mxu0
      %v2141 = vadd.f32 %v2006, %v2140
      %2142 = vmatmul.f32.gmra.mxu0 %v2081
      %v2143 = vpop.f32.mrf.mxu0
      %v2144 = vadd.f32 %v2006, %v2143
      %2145 = vmatmul.f32.gmra.mxu0 %v2083
      %v2146 = vpop.f32.mrf.mxu0
      %v2147 = vadd.f32 %v2006, %v2146
      %2148 = vmatmul.f32.gmra.mxu0 %v2085
      %v2149 = vpop.f32.mrf.mxu0
      %v2150 = vadd.f32 %v2006, %v2149
      %2151 = vdwg.mxu0
      %2152 = vst.msk [vmem:[%s307] sm:$0xff] %vm1092, %v2105
      %2153 = vst.msk [vmem:[%s307 + $0x8] sm:$0xff] %vm1092, %v2108
      %2154 = vst.msk [vmem:[%s307 + $0x10] sm:$0xff] %vm1092, %v2111
      %2155 = vst.msk [vmem:[%s307 + $0x18] sm:$0xff] %vm1092, %v2114
      %2156 = vst.msk [vmem:[%s307 + $0x20] sm:$0xff] %vm1092, %v2117
      %2157 = vst.msk [vmem:[%s307 + $0x28] sm:$0xff] %vm1092, %v2120
      %2158 = vst.msk [vmem:[%s307 + $0x30] sm:$0xff] %vm1092, %v2123
      %2159 = vst.msk [vmem:[%s307 + $0x38] sm:$0xff] %vm1092, %v2126
      %2160 = vst.msk [vmem:[%s307 + $0x40] sm:$0xff] %vm1092, %v2129
      %2161 = vst.msk [vmem:[%s307 + $0x48] sm:$0xff] %vm1092, %v2132
      %2162 = vst.msk [vmem:[%s307 + $0x50] sm:$0xff] %vm1092, %v2135
      %2163 = vst.msk [vmem:[%s307 + $0x58] sm:$0xff] %vm1092, %v2138
      %2164 = vst.msk [vmem:[%s307 + $0x60] sm:$0xff] %vm1092, %v2141
      %2165 = vst.msk [vmem:[%s307 + $0x68] sm:$0xff] %vm1092, %v2144
      %2166 = vst.msk [vmem:[%s307 + $0x70] sm:$0xff] %vm1092, %v2147
      %2167 = vst.msk [vmem:[%s307 + $0x78] sm:$0xff] %vm1092, %v2150
      %s2168 = smul.u32 16, %s19
      %p2169 = scmp.lt.s32.totalorder %s2168, 31
      %s2170 = scalar_select %p2169, %s2168, 31
      %s2171 = smul.addr %s2170, 8
      %s2172 = scalar_lea.vmem %s8, %s2171
      // Predicated region
      $region53: #{tpu_custom_call.1} parent=51 // pred_check
        %p2173 = pneg %p210
      $region54: #{tpu_custom_call.1} parent=51 // pred_check_branch
        %2175 = sbr.rel (%p2173) target = $region56
      $region55: #{tpu_custom_call.1} parent=51 // pred_region
        %s2176 = smul.u32 16, %s19
      $region56: #{tpu_custom_call.1} parent=51 // pred_fallthru
        _
    $region52: #{tpu_custom_call.1} parent=5 // pred_fallthru
      _
    %p2177 = scmp.le.s32.totalorder 2, %s14
    // Predicated region
    $region57: #{tpu_custom_call.1} parent=5 // pred_check
      %p2178 = pneg %p2177
    $region58: #{tpu_custom_call.1} parent=5 // pred_check_branch
      %2180 = sbr.rel (%p2178) target = $region60
    $region59: #{tpu_custom_call.1} parent=5 // pred_region
      %s2181 = ssub.s32 %s14, 2
      // Predicated region
      $region61: #{tpu_custom_call.1} parent=59 // pred_check
        %p2182 = pneg %p216
      $region62: #{tpu_custom_call.1} parent=59 // pred_check_branch
        %2184 = sbr.rel (%p2182) target = $region64
      $region63: #{tpu_custom_call.1} parent=59 // pred_region
        %s2185 = smul.u32 16, %s20
        %p2186 = scmp.lt.s32.totalorder %s2185, 31
        %s2187 = scalar_select %p2186, %s2185, 31
        %s2188 = smul.addr %s2187, 8
        %s2189 = scalar_lea.vmem %s8, %s2188
      $region64: #{tpu_custom_call.1} parent=59 // pred_fallthru
        _
    $region60: #{tpu_custom_call.1} parent=5 // pred_fallthru
      _
  $region6: #{tpu_custom_call.1} parent=0 // loop_footer
    %s18 = sadd.s32 1, %s14
  $region7: #{tpu_custom_call.1} parent=0 // loop_footer_branch
    %13 = sbr.rel target = $region3
  $region8: #{tpu_custom_call.1} parent=0 // loop_exit
    _

</llo_original>
